<compile_context>
chip_gen: v6e
topology: v6e:2x2x1
jax: 0.10.0
libtpu: 0.0.40
codegen_flags: <defaults>
</compile_context>

<pallas_src>
import math

import jax
import jax.numpy as jnp
import numpy as np
from jax.experimental import pallas as pl
from jax.experimental.pallas import tpu as pltpu

# ---- config (plays the role of `args`) --------------------------------------
BATCH = 2
SEQ = 8
D_MODEL = 32
N_HEADS = 4
D_FF = 64
MOVING_AVG = (3, 5)          # odd kernel sizes -> output length == input length
ENCODER_LAYERS = 1           # the provided module is a single Encoder layer
ACTIVATION = "relu"          # args.activation
NK = len(MOVING_AVG)
D_HEAD = D_MODEL // N_HEADS
HPAD = 128                   # per-head lane padding (one full lane block per head)
NL = ENCODER_LAYERS

# offsets into the flattened decomposition-scalar SMEM array
W1_OFF = 0 * NL * NK
B1_OFF = 1 * NL * NK
W2_OFF = 2 * NL * NK
B2_OFF = 3 * NL * NK


# ---- fused kernel ------------------------------------------------------------
def encoder_kernel(x_ref, avg_ref, wqkv_ref, wo_ref, w1_ref, w2_ref, dsc_ref, o_ref):
    """One grid step == one batch element; the whole layer stack runs in VMEM.

    x_ref    : [L, D]                 this batch element's activations
    avg_ref  : [NK*L, L]   bf16       stacked moving-average matrices (per sequence)
    wqkv_ref : [NL, D, 3*H*128] bf16  q/k/v projection, each head zero-padded to 128 lanes
                                      (1/sqrt(d_head) folded into the q block)
    wo_ref   : [NL, H*128, D]   bf16  output projection, head rows zero-padded to 128,
                                      residual factor 2 folded in
    w1_ref   : [NL, D, D_FF]    bf16  conv1 (k=1, no bias) as channel matmul
    w2_ref   : [NL, D_FF, D]    bf16  conv2 (k=1, no bias) as channel matmul
    dsc_ref  : [4*NL*NK]  f32 SMEM    decomposition softmax Linear(1, NK) scalars,
                                      layout [d1w | d1b | d2w | d2b]
    """
    x = x_ref[...].astype(jnp.float32)                     # [L, D]
    avg = avg_ref[...]                                     # [NK*L, L] bf16

    def decomp(z, w_base, b_base):
        # all NK moving averages for this batch element in one MXU matmul
        means = jnp.dot(avg, z.astype(jnp.bfloat16),
                        preferred_element_type=jnp.float32)          # [NK*L, D]
        logits = [z * dsc_ref[w_base + k] + dsc_ref[b_base + k] for k in range(NK)]
        m = logits[0]
        for k in range(1, NK):
            m = jnp.maximum(m, logits[k])
        exps = [jnp.exp(l - m) for l in logits]
        denom = exps[0]
        for k in range(1, NK):
            denom = denom + exps[k]
        inv = pl.reciprocal(denom, approx=True)                       # EUP, off the VALU
        mean = jnp.zeros_like(z)
        for k in range(NK):
            mean = mean + means[k * SEQ:(k + 1) * SEQ, :] * (exps[k] * inv)
        return z - mean

    for layer in range(ENCODER_LAYERS):                   # static unroll
        wqkv = wqkv_ref[layer]                             # [D, 3*H*128] bf16
        wo = wo_ref[layer]                                 # [H*128, D]   bf16 (x2 folded)

        # fused q/k/v projection (bf16 MXU, f32 accumulate)
        qkv = jnp.dot(x.astype(jnp.bfloat16), wqkv,
                      preferred_element_type=jnp.float32).astype(jnp.bfloat16)  # [L, 3*H*128]

        heads = []
        for h in range(N_HEADS):
            qh = qkv[:, (0 * N_HEADS + h) * HPAD:(0 * N_HEADS + h + 1) * HPAD]
            kh = qkv[:, (1 * N_HEADS + h) * HPAD:(1 * N_HEADS + h + 1) * HPAD]
            vh = qkv[:, (2 * N_HEADS + h) * HPAD:(2 * N_HEADS + h + 1) * HPAD]
            # q @ k^T: full-depth MXU push; zero-padded lanes contribute nothing
            s = jax.lax.dot_general(qh, kh, (((1,), (1,)), ((), ())),
                                    preferred_element_type=jnp.float32)   # [L, L]
            s = s - jnp.max(s, axis=-1, keepdims=True)     # kept for robustness to unbounded inputs
            p = jnp.exp(s)
            p = p * pl.reciprocal(jnp.sum(p, axis=-1, keepdims=True), approx=True)
            heads.append(jnp.dot(p.astype(jnp.bfloat16), vh,
                                 preferred_element_type=jnp.float32))     # [L, 128]
        # single output projection over all heads (128-lane-aligned concat, one matmul)
        attn_cat = jnp.concatenate(heads, axis=1).astype(jnp.bfloat16)    # [L, H*128]
        # x = attention + dropout(attention) == 2*attention; the factor 2 lives in wo
        x = jnp.dot(attn_cat, wo, preferred_element_type=jnp.float32)     # [L, D]

        # series decomposition 1
        x = decomp(x, W1_OFF + layer * NK, B1_OFF + layer * NK)

        # position-wise FFN: Conv1d(k=1, bias=False) == channel matmul
        h1 = jnp.dot(x.astype(jnp.bfloat16), w1_ref[layer],
                     preferred_element_type=jnp.float32)                  # [L, D_FF]
        h1 = jnp.maximum(h1, 0.0)                                         # relu (args.activation)
        x2 = jnp.dot(h1.astype(jnp.bfloat16), w2_ref[layer],
                     preferred_element_type=jnp.float32)                  # [L, D]

        # series decomposition 2
        x = decomp(x + x2, W2_OFF + layer * NK, B2_OFF + layer * NK)

    o_ref[...] = x.astype(o_ref.dtype)


# ---- wrapper ----------------------------------------------------------------
def _const_spec(shape):
    zeros = (0,) * len(shape)
    return pl.BlockSpec(tuple(shape), lambda b, _z=zeros: _z)   # same block every grid step


def encoder_forward(x, kp):
    B, L, D = x.shape

    per_layer_flops = (
        2 * L * D_MODEL * (3 * N_HEADS * HPAD)            # fused qkv projection
        + N_HEADS * 2 * (2 * L * L * HPAD)                # scores + p@v
        + 2 * L * (N_HEADS * HPAD) * D_MODEL              # output projection
        + 2 * (2 * (NK * L) * L * D_MODEL)                # two decompositions
        + 2 * L * D_MODEL * D_FF + 2 * L * D_FF * D_MODEL # conv1 + conv2 (k=1)
    )
    flops = int(B * ENCODER_LAYERS * per_layer_flops)
    transcendentals = int(B * ENCODER_LAYERS * (N_HEADS * L * L + 2 * NK * L * D_MODEL))
    bytes_accessed = int(2 * x.size * x.dtype.itemsize
                         + sum(int(v.size) * v.dtype.itemsize for v in kp.values()))

    grid_spec = pltpu.PrefetchScalarGridSpec(
        num_scalar_prefetch=0,
        grid=(B,),
        in_specs=[
            pl.BlockSpec((None, L, D), lambda b: (b, 0, 0)),            # x (per batch element)
            _const_spec(kp["avg"].shape),                               # avg  [NK*L, L]
            _const_spec(kp["wqkv"].shape),                              # wqkv [NL, D, 3*H*128]
            _const_spec(kp["wo"].shape),                                # wo   [NL, H*128, D]
            _const_spec(kp["w1"].shape),                                # w1   [NL, D, D_FF]
            _const_spec(kp["w2"].shape),                                # w2   [NL, D_FF, D]
            pl.BlockSpec(memory_space=pltpu.MemorySpace.SMEM),          # decomp scalars (1-D)
        ],
        out_specs=pl.BlockSpec((None, L, D), lambda b: (b, 0, 0)),
    )

    out = pl.pallas_call(
        encoder_kernel,
        out_shape=jax.ShapeDtypeStruct((B, L, D), x.dtype),
        grid_spec=grid_spec,
        compiler_params=pltpu.CompilerParams(dimension_semantics=("parallel",)),
        cost_estimate=pl.CostEstimate(flops=flops, transcendentals=transcendentals,
                                      bytes_accessed=bytes_accessed),
    )(x, kp["avg"], kp["wqkv"], kp["wo"], kp["w1"], kp["w2"], kp["dsc"])
    return out


# ---- host-side parameter preparation -----------------------------------------
def build_avg_mats(L, kernel_sizes):
    """[NK, L, L] matrices reproducing replicate-padded AvgPool1d(k, stride=1)."""
    mats = []
    for ksz in kernel_sizes:
        pad = (ksz - 1) // 2
        A = np.zeros((L, L), np.float32)
        for i in range(L):
            for t in range(ksz):
                j = min(max(i - pad + t, 0), L - 1)
                A[i, j] += 1.0 / ksz
        mats.append(A)
    return np.stack(mats)


def prepare_kernel_params(params, A):
    """Pad heads to 128-lane blocks, fold constants, stack per-layer weights (bf16)."""
    scale = 1.0 / math.sqrt(D_HEAD)
    wqkv = np.zeros((NL, D_MODEL, 3 * N_HEADS * HPAD), np.float32)
    wo_p = np.zeros((NL, N_HEADS * HPAD, D_MODEL), np.float32)
    w1 = np.zeros((NL, D_MODEL, D_FF), np.float32)
    w2 = np.zeros((NL, D_FF, D_MODEL), np.float32)
    dsc = np.zeros((4 * NL * NK,), np.float32)
    for l, p in enumerate(params):
        wq = np.asarray(p["wq"]) * scale              # 1/sqrt(d_head) folded into q
        wk = np.asarray(p["wk"])
        wv = np.asarray(p["wv"])
        wo = 2.0 * np.asarray(p["wo"])                # "x + dropout(x)" residual factor folded
        for h in range(N_HEADS):
            src = slice(h * D_HEAD, (h + 1) * D_HEAD)
            wqkv[l, :, (0 * N_HEADS + h) * HPAD:(0 * N_HEADS + h) * HPAD + D_HEAD] = wq[:, src]
            wqkv[l, :, (1 * N_HEADS + h) * HPAD:(1 * N_HEADS + h) * HPAD + D_HEAD] = wk[:, src]
            wqkv[l, :, (2 * N_HEADS + h) * HPAD:(2 * N_HEADS + h) * HPAD + D_HEAD] = wv[:, src]
            wo_p[l, h * HPAD:h * HPAD + D_HEAD, :] = wo[src, :]
        w1[l] = np.asarray(p["w1"])
        w2[l] = np.asarray(p["w2"])
        dsc[W1_OFF + l * NK:W1_OFF + (l + 1) * NK] = np.asarray(p["d1w"])
        dsc[B1_OFF + l * NK:B1_OFF + (l + 1) * NK] = np.asarray(p["d1b"])
        dsc[W2_OFF + l * NK:W2_OFF + (l + 1) * NK] = np.asarray(p["d2w"])
        dsc[B2_OFF + l * NK:B2_OFF + (l + 1) * NK] = np.asarray(p["d2b"])

    avg_stack = np.asarray(A).reshape(NK * SEQ, SEQ)   # per-sequence (no batch block-diag)

    return dict(
        wqkv=jnp.asarray(wqkv, jnp.bfloat16),
        wo=jnp.asarray(wo_p, jnp.bfloat16),
        w1=jnp.asarray(w1, jnp.bfloat16),
        w2=jnp.asarray(w2, jnp.bfloat16),
        avg=jnp.asarray(avg_stack, jnp.bfloat16),
        dsc=jnp.asarray(dsc, jnp.float32),
    )


def init_params(key):
    params = []
    for layer in range(ENCODER_LAYERS):
        keys = jax.random.split(jax.random.fold_in(key, layer), 10)
        nrm = lambda k, shape, s: jax.random.normal(k, shape, jnp.float32) * s
        s_d = 1.0 / math.sqrt(D_MODEL)
        s_f = 1.0 / math.sqrt(D_FF)
        params.append(dict(
            wq=nrm(keys[0], (D_MODEL, D_MODEL), s_d),
            wk=nrm(keys[1], (D_MODEL, D_MODEL), s_d),
            wv=nrm(keys[2], (D_MODEL, D_MODEL), s_d),
            wo=nrm(keys[3], (D_MODEL, D_MODEL), s_d),
            w1=nrm(keys[4], (D_MODEL, D_FF), s_d),    # == conv1.weight[:, :, 0].T
            w2=nrm(keys[5], (D_FF, D_MODEL), s_f),    # == conv2.weight[:, :, 0].T
            d1w=nrm(keys[6], (NK,), 1.0),             # Linear(1, NK).weight.squeeze(-1)
            d1b=nrm(keys[7], (NK,), 0.1),
            d2w=nrm(keys[8], (NK,), 1.0),
            d2b=nrm(keys[9], (NK,), 0.1),
        ))
    return params


# ---- pure-JAX reference (for correctness check) ------------------------------
def ref_decomp(x, A, w, b):
    logits = x[..., None] * w + b                         # [B, L, D, NK]
    wts = jax.nn.softmax(logits, axis=-1)
    mavg = jnp.einsum('kij,bjd->bidk', A, x)              # [B, L, D, NK]
    return x - jnp.sum(mavg * wts, axis=-1)


def ref_layer(x, p, A):
    B, L, D = x.shape
    q = (x @ p["wq"]).reshape(B, L, N_HEADS, D_HEAD)
    k = (x @ p["wk"]).reshape(B, L, N_HEADS, D_HEAD)
    v = (x @ p["wv"]).reshape(B, L, N_HEADS, D_HEAD)
    s = jnp.einsum('blhd,bmhd->bhlm', q, k) / math.sqrt(D_HEAD)
    pr = jax.nn.softmax(s, axis=-1)
    out = jnp.einsum('bhlm,bmhd->blhd', pr, v).reshape(B, L, D) @ p["wo"]
    x = out + out                                         # x + dropout(x), eval mode
    x = ref_decomp(x, A, p["d1w"], p["d1b"])
    x2 = jax.nn.relu(x @ p["w1"]) @ p["w2"]
    return ref_decomp(x + x2, A, p["d2w"], p["d2b"])


def ref_stack(x, params, A):
    for p in params:
        x = ref_layer(x, p, A)
    return x


if __name__ == "__main__":
    key = jax.random.PRNGKey(0)
    kx, kparam = jax.random.split(key)
    x = jax.random.normal(kx, (BATCH, SEQ, D_MODEL), jnp.float32)
    params = init_params(kparam)
    A = build_avg_mats(SEQ, MOVING_AVG)                   # [NK, L, L]
    kernel_params = prepare_kernel_params(params, A)

    out = jax.block_until_ready(encoder_forward(x, kernel_params))
    ref = jax.block_until_ready(ref_stack(x, params, jnp.asarray(A)))

    # Tolerance accounts for bf16 matmul operands (weights / activations cast to bf16,
    # f32 accumulation) and the EUP approximate reciprocals in the softmax /
    # decomposition normalizations.
    np.testing.assert_allclose(np.asarray(out), np.asarray(ref), rtol=3e-2, atol=3e-2)
    print("KERNEL_OK")
</pallas_src>

<mosaic_0001>
module attributes {stable_mosaic.version = 11 : i64} {
  func.func @encoder_kernel(%arg0: i32, %arg1: memref<1x8x32xf32, #tpu.memory_space<vmem>>, %arg2: memref<16x8xbf16, #tpu.memory_space<vmem>>, %arg3: memref<1x32x1536xbf16, #tpu.memory_space<vmem>>, %arg4: memref<1x512x32xbf16, #tpu.memory_space<vmem>>, %arg5: memref<1x32x64xbf16, #tpu.memory_space<vmem>>, %arg6: memref<1x64x32xbf16, #tpu.memory_space<vmem>>, %arg7: memref<8xf32, #tpu.memory_space<smem>>, %arg8: memref<1x8x32xf32, #tpu.memory_space<vmem>>) attributes {dimension_semantics = [#tpu.dimension_semantics<parallel>], iteration_bounds = array<i64: 2>, scalar_prefetch = 0 : i64, scratch_operands = 0 : i64, tpu.core_type = #tpu.core_type<tc>, window_params = [{transform_indices = @transform_0, window_bounds = array<i64: 1, 8, 32>}, {pipeline_mode = #tpu.pipeline_mode<synchronous>, transform_indices = @transform_1, window_bounds = array<i64: 16, 8>}, {pipeline_mode = #tpu.pipeline_mode<synchronous>, transform_indices = @transform_2, window_bounds = array<i64: 1, 32, 1536>}, {pipeline_mode = #tpu.pipeline_mode<synchronous>, transform_indices = @transform_3, window_bounds = array<i64: 1, 512, 32>}, {pipeline_mode = #tpu.pipeline_mode<synchronous>, transform_indices = @transform_4, window_bounds = array<i64: 1, 32, 64>}, {pipeline_mode = #tpu.pipeline_mode<synchronous>, transform_indices = @transform_5, window_bounds = array<i64: 1, 64, 32>}, {transform_indices = @transform_6, window_bounds = array<i64: 8>}, {transform_indices = @transform_7, window_bounds = array<i64: 1, 8, 32>}]} {
    %c0 = arith.constant 0 : index
    %c0_0 = arith.constant 0 : index
    %c0_1 = arith.constant 0 : index
    %0 = vector.load %arg1[%c0, %c0_0, %c0_1] : memref<1x8x32xf32, #tpu.memory_space<vmem>>, vector<1x8x32xf32>
    %1 = vector.shape_cast %0 : vector<1x8x32xf32> to vector<8x32xf32>
    %c0_2 = arith.constant 0 : index
    %c0_3 = arith.constant 0 : index
    %2 = vector.load %arg2[%c0_2, %c0_3] : memref<16x8xbf16, #tpu.memory_space<vmem>>, vector<16x8xbf16>
    %c0_4 = arith.constant 0 : index
    %c0_5 = arith.constant 0 : index
    %c0_6 = arith.constant 0 : index
    %3 = vector.load %arg3[%c0_4, %c0_5, %c0_6] : memref<1x32x1536xbf16, #tpu.memory_space<vmem>>, vector<1x32x1536xbf16>
    %4 = vector.shape_cast %3 : vector<1x32x1536xbf16> to vector<32x1536xbf16>
    %c0_7 = arith.constant 0 : index
    %c0_8 = arith.constant 0 : index
    %c0_9 = arith.constant 0 : index
    %5 = vector.load %arg4[%c0_7, %c0_8, %c0_9] : memref<1x512x32xbf16, #tpu.memory_space<vmem>>, vector<1x512x32xbf16>
    %6 = vector.shape_cast %5 : vector<1x512x32xbf16> to vector<512x32xbf16>
    %7 = arith.truncf %1 : vector<8x32xf32> to vector<8x32xbf16>
    %cst = arith.constant dense<0.000000e+00> : vector<8x1536xf32>
    %8 = tpu.matmul %7, %4, %cst {dimension_numbers = #tpu.dot_dimension_numbers<[1], [0], [0], [1], [0, 0, 1, 1], [], []>} : vector<8x32xbf16>, vector<32x1536xbf16>, vector<8x1536xf32> -> vector<8x1536xf32>
    %9 = arith.truncf %8 : vector<8x1536xf32> to vector<8x1536xbf16>
    %10 = vector.extract_strided_slice %9 {offsets = [0, 0], sizes = [8, 128], strides = [1, 1]} : vector<8x1536xbf16> to vector<8x128xbf16>
    %11 = vector.extract_strided_slice %9 {offsets = [0, 512], sizes = [8, 128], strides = [1, 1]} : vector<8x1536xbf16> to vector<8x128xbf16>
    %12 = vector.extract_strided_slice %9 {offsets = [0, 1024], sizes = [8, 128], strides = [1, 1]} : vector<8x1536xbf16> to vector<8x128xbf16>
    %cst_10 = arith.constant dense<0.000000e+00> : vector<8x8xf32>
    %13 = tpu.matmul %10, %11, %cst_10 {dimension_numbers = #tpu.dot_dimension_numbers<[1], [1], [0], [0], [0, 0, 1, 0], [], []>} : vector<8x128xbf16>, vector<8x128xbf16>, vector<8x8xf32> -> vector<8x8xf32>
    %cst_11 = arith.constant dense<0xFF800000> : vector<8xf32>
    %14 = vector.multi_reduction <maximumf>, %13, %cst_11 [1] : vector<8x8xf32> to vector<8xf32>
    %15 = vector.shape_cast %14 : vector<8xf32> to vector<8x1xf32>
    %16 = vector.broadcast %15 : vector<8x1xf32> to vector<8x8xf32>
    %17 = arith.subf %13, %16 : vector<8x8xf32>
    %18 = math.exp %17 : vector<8x8xf32>
    %cst_12 = arith.constant dense<0.000000e+00> : vector<8xf32>
    %19 = vector.multi_reduction <add>, %18, %cst_12 [1] : vector<8x8xf32> to vector<8xf32>
    %20 = vector.shape_cast %19 : vector<8xf32> to vector<8x1xf32>
    %21 = tpu.reciprocal %20 {approx = true} : vector<8x1xf32> -> vector<8x1xf32>
    %22 = vector.broadcast %21 : vector<8x1xf32> to vector<8x8xf32>
    %23 = arith.mulf %18, %22 : vector<8x8xf32>
    %24 = arith.truncf %23 : vector<8x8xf32> to vector<8x8xbf16>
    %cst_13 = arith.constant dense<0.000000e+00> : vector<8x128xf32>
    %25 = tpu.matmul %24, %12, %cst_13 {dimension_numbers = #tpu.dot_dimension_numbers<[1], [0], [0], [1], [0, 0, 1, 1], [], []>} : vector<8x8xbf16>, vector<8x128xbf16>, vector<8x128xf32> -> vector<8x128xf32>
    %26 = vector.extract_strided_slice %9 {offsets = [0, 128], sizes = [8, 128], strides = [1, 1]} : vector<8x1536xbf16> to vector<8x128xbf16>
    %27 = vector.extract_strided_slice %9 {offsets = [0, 640], sizes = [8, 128], strides = [1, 1]} : vector<8x1536xbf16> to vector<8x128xbf16>
    %28 = vector.extract_strided_slice %9 {offsets = [0, 1152], sizes = [8, 128], strides = [1, 1]} : vector<8x1536xbf16> to vector<8x128xbf16>
    %cst_14 = arith.constant dense<0.000000e+00> : vector<8x8xf32>
    %29 = tpu.matmul %26, %27, %cst_14 {dimension_numbers = #tpu.dot_dimension_numbers<[1], [1], [0], [0], [0, 0, 1, 0], [], []>} : vector<8x128xbf16>, vector<8x128xbf16>, vector<8x8xf32> -> vector<8x8xf32>
    %cst_15 = arith.constant dense<0xFF800000> : vector<8xf32>
    %30 = vector.multi_reduction <maximumf>, %29, %cst_15 [1] : vector<8x8xf32> to vector<8xf32>
    %31 = vector.shape_cast %30 : vector<8xf32> to vector<8x1xf32>
    %32 = vector.broadcast %31 : vector<8x1xf32> to vector<8x8xf32>
    %33 = arith.subf %29, %32 : vector<8x8xf32>
    %34 = math.exp %33 : vector<8x8xf32>
    %cst_16 = arith.constant dense<0.000000e+00> : vector<8xf32>
    %35 = vector.multi_reduction <add>, %34, %cst_16 [1] : vector<8x8xf32> to vector<8xf32>
    %36 = vector.shape_cast %35 : vector<8xf32> to vector<8x1xf32>
    %37 = tpu.reciprocal %36 {approx = true} : vector<8x1xf32> -> vector<8x1xf32>
    %38 = vector.broadcast %37 : vector<8x1xf32> to vector<8x8xf32>
    %39 = arith.mulf %34, %38 : vector<8x8xf32>
    %40 = arith.truncf %39 : vector<8x8xf32> to vector<8x8xbf16>
    %cst_17 = arith.constant dense<0.000000e+00> : vector<8x128xf32>
    %41 = tpu.matmul %40, %28, %cst_17 {dimension_numbers = #tpu.dot_dimension_numbers<[1], [0], [0], [1], [0, 0, 1, 1], [], []>} : vector<8x8xbf16>, vector<8x128xbf16>, vector<8x128xf32> -> vector<8x128xf32>
    %42 = vector.extract_strided_slice %9 {offsets = [0, 256], sizes = [8, 128], strides = [1, 1]} : vector<8x1536xbf16> to vector<8x128xbf16>
    %43 = vector.extract_strided_slice %9 {offsets = [0, 768], sizes = [8, 128], strides = [1, 1]} : vector<8x1536xbf16> to vector<8x128xbf16>
    %44 = vector.extract_strided_slice %9 {offsets = [0, 1280], sizes = [8, 128], strides = [1, 1]} : vector<8x1536xbf16> to vector<8x128xbf16>
    %cst_18 = arith.constant dense<0.000000e+00> : vector<8x8xf32>
    %45 = tpu.matmul %42, %43, %cst_18 {dimension_numbers = #tpu.dot_dimension_numbers<[1], [1], [0], [0], [0, 0, 1, 0], [], []>} : vector<8x128xbf16>, vector<8x128xbf16>, vector<8x8xf32> -> vector<8x8xf32>
    %cst_19 = arith.constant dense<0xFF800000> : vector<8xf32>
    %46 = vector.multi_reduction <maximumf>, %45, %cst_19 [1] : vector<8x8xf32> to vector<8xf32>
    %47 = vector.shape_cast %46 : vector<8xf32> to vector<8x1xf32>
    %48 = vector.broadcast %47 : vector<8x1xf32> to vector<8x8xf32>
    %49 = arith.subf %45, %48 : vector<8x8xf32>
    %50 = math.exp %49 : vector<8x8xf32>
    %cst_20 = arith.constant dense<0.000000e+00> : vector<8xf32>
    %51 = vector.multi_reduction <add>, %50, %cst_20 [1] : vector<8x8xf32> to vector<8xf32>
    %52 = vector.shape_cast %51 : vector<8xf32> to vector<8x1xf32>
    %53 = tpu.reciprocal %52 {approx = true} : vector<8x1xf32> -> vector<8x1xf32>
    %54 = vector.broadcast %53 : vector<8x1xf32> to vector<8x8xf32>
    %55 = arith.mulf %50, %54 : vector<8x8xf32>
    %56 = arith.truncf %55 : vector<8x8xf32> to vector<8x8xbf16>
    %cst_21 = arith.constant dense<0.000000e+00> : vector<8x128xf32>
    %57 = tpu.matmul %56, %44, %cst_21 {dimension_numbers = #tpu.dot_dimension_numbers<[1], [0], [0], [1], [0, 0, 1, 1], [], []>} : vector<8x8xbf16>, vector<8x128xbf16>, vector<8x128xf32> -> vector<8x128xf32>
    %58 = vector.extract_strided_slice %9 {offsets = [0, 384], sizes = [8, 128], strides = [1, 1]} : vector<8x1536xbf16> to vector<8x128xbf16>
    %59 = vector.extract_strided_slice %9 {offsets = [0, 896], sizes = [8, 128], strides = [1, 1]} : vector<8x1536xbf16> to vector<8x128xbf16>
    %60 = vector.extract_strided_slice %9 {offsets = [0, 1408], sizes = [8, 128], strides = [1, 1]} : vector<8x1536xbf16> to vector<8x128xbf16>
    %cst_22 = arith.constant dense<0.000000e+00> : vector<8x8xf32>
    %61 = tpu.matmul %58, %59, %cst_22 {dimension_numbers = #tpu.dot_dimension_numbers<[1], [1], [0], [0], [0, 0, 1, 0], [], []>} : vector<8x128xbf16>, vector<8x128xbf16>, vector<8x8xf32> -> vector<8x8xf32>
    %cst_23 = arith.constant dense<0xFF800000> : vector<8xf32>
    %62 = vector.multi_reduction <maximumf>, %61, %cst_23 [1] : vector<8x8xf32> to vector<8xf32>
    %63 = vector.shape_cast %62 : vector<8xf32> to vector<8x1xf32>
    %64 = vector.broadcast %63 : vector<8x1xf32> to vector<8x8xf32>
    %65 = arith.subf %61, %64 : vector<8x8xf32>
    %66 = math.exp %65 : vector<8x8xf32>
    %cst_24 = arith.constant dense<0.000000e+00> : vector<8xf32>
    %67 = vector.multi_reduction <add>, %66, %cst_24 [1] : vector<8x8xf32> to vector<8xf32>
    %68 = vector.shape_cast %67 : vector<8xf32> to vector<8x1xf32>
    %69 = tpu.reciprocal %68 {approx = true} : vector<8x1xf32> -> vector<8x1xf32>
    %70 = vector.broadcast %69 : vector<8x1xf32> to vector<8x8xf32>
    %71 = arith.mulf %66, %70 : vector<8x8xf32>
    %72 = arith.truncf %71 : vector<8x8xf32> to vector<8x8xbf16>
    %cst_25 = arith.constant dense<0.000000e+00> : vector<8x128xf32>
    %73 = tpu.matmul %72, %60, %cst_25 {dimension_numbers = #tpu.dot_dimension_numbers<[1], [0], [0], [1], [0, 0, 1, 1], [], []>} : vector<8x8xbf16>, vector<8x128xbf16>, vector<8x128xf32> -> vector<8x128xf32>
    %74 = tpu.concatenate %25, %41, %57, %73 in 1 : vector<8x128xf32>, vector<8x128xf32>, vector<8x128xf32>, vector<8x128xf32> -> vector<8x512xf32>
    %75 = arith.truncf %74 : vector<8x512xf32> to vector<8x512xbf16>
    %cst_26 = arith.constant dense<0.000000e+00> : vector<8x32xf32>
    %76 = tpu.matmul %75, %6, %cst_26 {dimension_numbers = #tpu.dot_dimension_numbers<[1], [0], [0], [1], [0, 0, 1, 1], [], []>} : vector<8x512xbf16>, vector<512x32xbf16>, vector<8x32xf32> -> vector<8x32xf32>
    %77 = arith.truncf %76 : vector<8x32xf32> to vector<8x32xbf16>
    %cst_27 = arith.constant dense<0.000000e+00> : vector<16x32xf32>
    %78 = tpu.matmul %2, %77, %cst_27 {dimension_numbers = #tpu.dot_dimension_numbers<[1], [0], [0], [1], [0, 0, 1, 1], [], []>} : vector<16x8xbf16>, vector<8x32xbf16>, vector<16x32xf32> -> vector<16x32xf32>
    %c0_28 = arith.constant 0 : index
    %79 = memref.load %arg7[%c0_28] : memref<8xf32, #tpu.memory_space<smem>>
    %80 = vector.broadcast %79 : f32 to vector<8x32xf32>
    %81 = arith.mulf %76, %80 : vector<8x32xf32>
    %c2 = arith.constant 2 : index
    %82 = memref.load %arg7[%c2] : memref<8xf32, #tpu.memory_space<smem>>
    %83 = vector.broadcast %82 : f32 to vector<8x32xf32>
    %84 = arith.addf %81, %83 : vector<8x32xf32>
    %c1 = arith.constant 1 : index
    %85 = memref.load %arg7[%c1] : memref<8xf32, #tpu.memory_space<smem>>
    %86 = vector.broadcast %85 : f32 to vector<8x32xf32>
    %87 = arith.mulf %76, %86 : vector<8x32xf32>
    %c3 = arith.constant 3 : index
    %88 = memref.load %arg7[%c3] : memref<8xf32, #tpu.memory_space<smem>>
    %89 = vector.broadcast %88 : f32 to vector<8x32xf32>
    %90 = arith.addf %87, %89 : vector<8x32xf32>
    %91 = arith.maximumf %84, %90 : vector<8x32xf32>
    %92 = arith.subf %84, %91 : vector<8x32xf32>
    %93 = math.exp %92 : vector<8x32xf32>
    %94 = arith.subf %90, %91 : vector<8x32xf32>
    %95 = math.exp %94 : vector<8x32xf32>
    %96 = arith.addf %93, %95 : vector<8x32xf32>
    %97 = tpu.reciprocal %96 {approx = true} : vector<8x32xf32> -> vector<8x32xf32>
    %cst_29 = arith.constant 0.000000e+00 : f32
    %98 = vector.broadcast %cst_29 : f32 to vector<8x32xf32>
    %99 = vector.extract_strided_slice %78 {offsets = [0, 0], sizes = [8, 32], strides = [1, 1]} : vector<16x32xf32> to vector<8x32xf32>
    %100 = arith.mulf %93, %97 : vector<8x32xf32>
    %101 = arith.mulf %99, %100 : vector<8x32xf32>
    %102 = arith.addf %98, %101 : vector<8x32xf32>
    %103 = vector.extract_strided_slice %78 {offsets = [8, 0], sizes = [8, 32], strides = [1, 1]} : vector<16x32xf32> to vector<8x32xf32>
    %104 = arith.mulf %95, %97 : vector<8x32xf32>
    %105 = arith.mulf %103, %104 : vector<8x32xf32>
    %106 = arith.addf %102, %105 : vector<8x32xf32>
    %107 = arith.subf %76, %106 : vector<8x32xf32>
    %108 = arith.truncf %107 : vector<8x32xf32> to vector<8x32xbf16>
    %c0_30 = arith.constant 0 : index
    %c0_31 = arith.constant 0 : index
    %c0_32 = arith.constant 0 : index
    %109 = vector.load %arg5[%c0_30, %c0_31, %c0_32] : memref<1x32x64xbf16, #tpu.memory_space<vmem>>, vector<1x32x64xbf16>
    %110 = vector.shape_cast %109 : vector<1x32x64xbf16> to vector<32x64xbf16>
    %cst_33 = arith.constant dense<0.000000e+00> : vector<8x64xf32>
    %111 = tpu.matmul %108, %110, %cst_33 {dimension_numbers = #tpu.dot_dimension_numbers<[1], [0], [0], [1], [0, 0, 1, 1], [], []>} : vector<8x32xbf16>, vector<32x64xbf16>, vector<8x64xf32> -> vector<8x64xf32>
    %cst_34 = arith.constant 0.000000e+00 : f32
    %112 = vector.broadcast %cst_34 : f32 to vector<8x64xf32>
    %113 = arith.maximumf %111, %112 : vector<8x64xf32>
    %114 = arith.truncf %113 : vector<8x64xf32> to vector<8x64xbf16>
    %c0_35 = arith.constant 0 : index
    %c0_36 = arith.constant 0 : index
    %c0_37 = arith.constant 0 : index
    %115 = vector.load %arg6[%c0_35, %c0_36, %c0_37] : memref<1x64x32xbf16, #tpu.memory_space<vmem>>, vector<1x64x32xbf16>
    %116 = vector.shape_cast %115 : vector<1x64x32xbf16> to vector<64x32xbf16>
    %cst_38 = arith.constant dense<0.000000e+00> : vector<8x32xf32>
    %117 = tpu.matmul %114, %116, %cst_38 {dimension_numbers = #tpu.dot_dimension_numbers<[1], [0], [0], [1], [0, 0, 1, 1], [], []>} : vector<8x64xbf16>, vector<64x32xbf16>, vector<8x32xf32> -> vector<8x32xf32>
    %118 = arith.addf %107, %117 : vector<8x32xf32>
    %119 = arith.truncf %118 : vector<8x32xf32> to vector<8x32xbf16>
    %cst_39 = arith.constant dense<0.000000e+00> : vector<16x32xf32>
    %120 = tpu.matmul %2, %119, %cst_39 {dimension_numbers = #tpu.dot_dimension_numbers<[1], [0], [0], [1], [0, 0, 1, 1], [], []>} : vector<16x8xbf16>, vector<8x32xbf16>, vector<16x32xf32> -> vector<16x32xf32>
    %c4 = arith.constant 4 : index
    %121 = memref.load %arg7[%c4] : memref<8xf32, #tpu.memory_space<smem>>
    %122 = vector.broadcast %121 : f32 to vector<8x32xf32>
    %123 = arith.mulf %118, %122 : vector<8x32xf32>
    %c6 = arith.constant 6 : index
    %124 = memref.load %arg7[%c6] : memref<8xf32, #tpu.memory_space<smem>>
    %125 = vector.broadcast %124 : f32 to vector<8x32xf32>
    %126 = arith.addf %123, %125 : vector<8x32xf32>
    %c5 = arith.constant 5 : index
    %127 = memref.load %arg7[%c5] : memref<8xf32, #tpu.memory_space<smem>>
    %128 = vector.broadcast %127 : f32 to vector<8x32xf32>
    %129 = arith.mulf %118, %128 : vector<8x32xf32>
    %c7 = arith.constant 7 : index
    %130 = memref.load %arg7[%c7] : memref<8xf32, #tpu.memory_space<smem>>
    %131 = vector.broadcast %130 : f32 to vector<8x32xf32>
    %132 = arith.addf %129, %131 : vector<8x32xf32>
    %133 = arith.maximumf %126, %132 : vector<8x32xf32>
    %134 = arith.subf %126, %133 : vector<8x32xf32>
    %135 = math.exp %134 : vector<8x32xf32>
    %136 = arith.subf %132, %133 : vector<8x32xf32>
    %137 = math.exp %136 : vector<8x32xf32>
    %138 = arith.addf %135, %137 : vector<8x32xf32>
    %139 = tpu.reciprocal %138 {approx = true} : vector<8x32xf32> -> vector<8x32xf32>
    %cst_40 = arith.constant 0.000000e+00 : f32
    %140 = vector.broadcast %cst_40 : f32 to vector<8x32xf32>
    %141 = vector.extract_strided_slice %120 {offsets = [0, 0], sizes = [8, 32], strides = [1, 1]} : vector<16x32xf32> to vector<8x32xf32>
    %142 = arith.mulf %135, %139 : vector<8x32xf32>
    %143 = arith.mulf %141, %142 : vector<8x32xf32>
    %144 = arith.addf %140, %143 : vector<8x32xf32>
    %145 = vector.extract_strided_slice %120 {offsets = [8, 0], sizes = [8, 32], strides = [1, 1]} : vector<16x32xf32> to vector<8x32xf32>
    %146 = arith.mulf %137, %139 : vector<8x32xf32>
    %147 = arith.mulf %145, %146 : vector<8x32xf32>
    %148 = arith.addf %144, %147 : vector<8x32xf32>
    %149 = arith.subf %118, %148 : vector<8x32xf32>
    %c0_41 = arith.constant 0 : index
    %c0_42 = arith.constant 0 : index
    %c0_43 = arith.constant 0 : index
    %150 = vector.load %arg8[%c0_41, %c0_42, %c0_43] : memref<1x8x32xf32, #tpu.memory_space<vmem>>, vector<1x8x32xf32>
    %151 = vector.shape_cast %150 : vector<1x8x32xf32> to vector<8x32xf32>
    %152 = vector.shape_cast %149 : vector<8x32xf32> to vector<1x8x32xf32>
    tpu.vector_store %arg8[%c0_41, %c0_42, %c0_43], %152 {strides = array<i32>} : memref<1x8x32xf32, #tpu.memory_space<vmem>>, vector<1x8x32xf32>,
    return
  }
  func.func @transform_0(%arg0: i32) -> (i32, i32, i32) {
    %c0_i32 = arith.constant 0 : i32
    %c0_i32_0 = arith.constant 0 : i32
    %c0_i32_1 = arith.constant 0 : i32
    return %arg0, %c0_i32, %c0_i32_0 : i32, i32, i32
  }
  func.func @transform_1(%arg0: i32) -> (i32, i32) {
    %c0_i32 = arith.constant 0 : i32
    %c0_i32_0 = arith.constant 0 : i32
    %c0_i32_1 = arith.constant 0 : i32
    return %c0_i32, %c0_i32_0 : i32, i32
  }
  func.func @transform_2(%arg0: i32) -> (i32, i32, i32) {
    %c0_i32 = arith.constant 0 : i32
    %c0_i32_0 = arith.constant 0 : i32
    %c0_i32_1 = arith.constant 0 : i32
    %c0_i32_2 = arith.constant 0 : i32
    return %c0_i32, %c0_i32_0, %c0_i32_1 : i32, i32, i32
  }
  func.func @transform_3(%arg0: i32) -> (i32, i32, i32) {
    %c0_i32 = arith.constant 0 : i32
    %c0_i32_0 = arith.constant 0 : i32
    %c0_i32_1 = arith.constant 0 : i32
    %c0_i32_2 = arith.constant 0 : i32
    return %c0_i32, %c0_i32_0, %c0_i32_1 : i32, i32, i32
  }
  func.func @transform_4(%arg0: i32) -> (i32, i32, i32) {
    %c0_i32 = arith.constant 0 : i32
    %c0_i32_0 = arith.constant 0 : i32
    %c0_i32_1 = arith.constant 0 : i32
    %c0_i32_2 = arith.constant 0 : i32
    return %c0_i32, %c0_i32_0, %c0_i32_1 : i32, i32, i32
  }
  func.func @transform_5(%arg0: i32) -> (i32, i32, i32) {
    %c0_i32 = arith.constant 0 : i32
    %c0_i32_0 = arith.constant 0 : i32
    %c0_i32_1 = arith.constant 0 : i32
    %c0_i32_2 = arith.constant 0 : i32
    return %c0_i32, %c0_i32_0, %c0_i32_1 : i32, i32, i32
  }
  func.func @transform_6(%arg0: i32) -> i32 {
    %c0_i32 = arith.constant 0 : i32
    %c0_i32_0 = arith.constant 0 : i32
    return %c0_i32 : i32
  }
  func.func @transform_7(%arg0: i32) -> (i32, i32, i32) {
    %c0_i32 = arith.constant 0 : i32
    %c0_i32_0 = arith.constant 0 : i32
    %c0_i32_1 = arith.constant 0 : i32
    return %arg0, %c0_i32, %c0_i32_0 : i32, i32, i32
  }
}

</mosaic_0001>

<llo_original>
// kernel: tpu_custom_call.1
$region0: #{tpu_custom_call.1}
  #allocation0 [shape = 'u32[]', space=smem, size = 0x4, offset = 0x4, fixed_abs, tag = 'smem constant byte address 0x4 - core index']
  #allocation1 [shape = 'u32[144,128]{1,0:T(1,128)}', space=vmem, size = 0x12000, scoped, tag = 'internal scratch']
  %s0 = inlined_call_operand.vmem [shape: f32[2,8,32], index: 0, kind: input, shape index: {}]
  %s1 = inlined_call_operand.vmem [shape: bf16[16,8], index: 1, kind: input, shape index: {}]
  %s2 = inlined_call_operand.vmem [shape: bf16[1,32,1536], index: 2, kind: input, shape index: {}]
  %s3 = inlined_call_operand.vmem [shape: bf16[1,512,32], index: 3, kind: input, shape index: {}]
  %s4 = inlined_call_operand.vmem [shape: bf16[1,32,64], index: 4, kind: input, shape index: {}]
  %s5 = inlined_call_operand.vmem [shape: bf16[1,64,32], index: 5, kind: input, shape index: {}]
  %s6 = inlined_call_operand.vmem [shape: f32[8], index: 6, kind: input, shape index: {}]
  %s7 = inlined_call_operand.hbm [shape: f32[2,8,32], index: 7, kind: output, shape index: {}]
  %s8 = sld [smem:[#allocation0]]
  $region65: #{tpu_custom_call.1} parent=0
    _
  %s10 = ssub.s32 1, %s8
  %s11 = scalar_select 0, %s10, %s8
  $region1: #{tpu_custom_call.1} parent=0
    #allocation2 [shape = 'u8[512]{0}', space=smem, size = 0x200, scoped, tag = 'input window, operand 6, single buffered']
    #allocation3 [shape = 's32[2]{0}', space=sflag, size = 0x8, scoped, tag = 'scoped memory for tpu_custom_call.1']
    #allocation4 [shape = 's32[2]{0}', space=sflag, size = 0x8, scoped, tag = 'scoped memory for tpu_custom_call.1']
    #allocation5 [shape = 'u8[8192]{0}', space=vmem, size = 0x2000, scoped, tag = 'output window, operand 0']
    %12 = vsyncpa [#allocation4], 0
    %13 = vsyncpa [#allocation3], 0
    %s14 = scalar_lea.sflag [#allocation3], 1
    %15 = vsyncpa %s14, 0
    loop: start=0, step=1, limit=4
    $region2: #{tpu_custom_call.1} parent=1 // loop_pre_header
      _
    $region3: #{tpu_custom_call.1} parent=1 // loop_header
      %s17 = sphi 0, %s21
      %p18 = scmp.ge.s32.totalorder %s17, 4
      %s27 = sphi 0, %s29
      %s30 = sphi 0, %s27
      %s31 = sphi 0, %s30
      %s47 = sphi 0, %s31
      %s51 = sphi 0, %s51
      %s53 = sphi 0, %s51
      %s54 = sphi 0, %s53
      %s68 = sphi 0, %s54
      %s72 = sphi 0, %s72
      %s74 = sphi 0, %s72
      %s75 = sphi 0, %s74
      %s89 = sphi 0, %s75
      %s93 = sphi 0, %s93
      %s95 = sphi 0, %s93
      %s96 = sphi 0, %s95
      %s110 = sphi 0, %s96
      %s114 = sphi 0, %s114
      %s116 = sphi 0, %s114
      %s117 = sphi 0, %s116
      %s131 = sphi 0, %s117
      %s135 = sphi 0, %s135
      %s137 = sphi 0, %s135
      %s138 = sphi 0, %s137
      %s152 = sphi 0, %s138
      %s156 = sphi 0, %s156
      %s158 = sphi 0, %s156
      %s159 = sphi 0, %s158
      %s173 = sphi 0, %s159
      %s179 = sphi 0, %s181
      %s182 = sphi 0, %s179
      %s183 = sphi 0, %s182
      %s199 = sphi 0, %s183
    $region4: #{tpu_custom_call.1} parent=1 // loop_header_branch
      %20 = sbr.rel (%p18) target = $region8
    $region5: #{tpu_custom_call.1} parent=1 // loop_body
      %s22 = ssub.s32 %s17, 1
      %s23 = ssub.s32 %s17, 2
      %s24 = sadd.s32 %s17, 1
      %s25 = ssub.s32 %s17, %s24
      %p26 = scmp.eq.s32.totalorder %s25, 0
      %s28 = sadd.s32 %s27, 1
      %s29 = scalar_select %p26, %s27, %s28
      %p32 = pneg %p26
      %p33 = scmp.eq.s32.totalorder %s17, 1
      %p34 = por %p32, %p33
      %p35 = scmp.ne.s32.totalorder %s27, %s30
      %p36 = scmp.eq.s32.totalorder %s17, 0
      %p37 = por %p35, %p36
      %p38 = scmp.ne.s32.totalorder %s27, %s30
      %p39 = scmp.eq.s32.totalorder %s22, 1
      %p40 = por %p38, %p39
      %p41 = scmp.ne.s32.totalorder %s30, %s31
      %p42 = scmp.eq.s32.totalorder %s22, 0
      %p43 = por %p41, %p42
      %p44 = scmp.ne.s32.totalorder %s30, %s31
      %p45 = scmp.eq.s32.totalorder %s23, 1
      %p46 = por %p44, %p45
      %p48 = scmp.ne.s32.totalorder %s31, %s47
      %p49 = scmp.eq.s32.totalorder %s23, 0
      %p50 = por %p48, %p49
      %s52 = sadd.s32 %s51, 1
      %p55 = scmp.eq.s32.totalorder %s17, 1
      %p56 = scmp.ne.s32.totalorder %s51, %s53
      %p57 = scmp.eq.s32.totalorder %s17, 0
      %p58 = por %p56, %p57
      %p59 = scmp.ne.s32.totalorder %s51, %s53
      %p60 = scmp.eq.s32.totalorder %s22, 1
      %p61 = por %p59, %p60
      %p62 = scmp.ne.s32.totalorder %s53, %s54
      %p63 = scmp.eq.s32.totalorder %s22, 0
      %p64 = por %p62, %p63
      %p65 = scmp.ne.s32.totalorder %s53, %s54
      %p66 = scmp.eq.s32.totalorder %s23, 1
      %p67 = por %p65, %p66
      %p69 = scmp.ne.s32.totalorder %s54, %s68
      %p70 = scmp.eq.s32.totalorder %s23, 0
      %p71 = por %p69, %p70
      %s73 = sadd.s32 %s72, 1
      %p76 = scmp.eq.s32.totalorder %s17, 1
      %p77 = scmp.ne.s32.totalorder %s72, %s74
      %p78 = scmp.eq.s32.totalorder %s17, 0
      %p79 = por %p77, %p78
      %p80 = scmp.ne.s32.totalorder %s72, %s74
      %p81 = scmp.eq.s32.totalorder %s22, 1
      %p82 = por %p80, %p81
      %p83 = scmp.ne.s32.totalorder %s74, %s75
      %p84 = scmp.eq.s32.totalorder %s22, 0
      %p85 = por %p83, %p84
      %p86 = scmp.ne.s32.totalorder %s74, %s75
      %p87 = scmp.eq.s32.totalorder %s23, 1
      %p88 = por %p86, %p87
      %p90 = scmp.ne.s32.totalorder %s75, %s89
      %p91 = scmp.eq.s32.totalorder %s23, 0
      %p92 = por %p90, %p91
      %s94 = sadd.s32 %s93, 1
      %p97 = scmp.eq.s32.totalorder %s17, 1
      %p98 = scmp.ne.s32.totalorder %s93, %s95
      %p99 = scmp.eq.s32.totalorder %s17, 0
      %p100 = por %p98, %p99
      %p101 = scmp.ne.s32.totalorder %s93, %s95
      %p102 = scmp.eq.s32.totalorder %s22, 1
      %p103 = por %p101, %p102
      %p104 = scmp.ne.s32.totalorder %s95, %s96
      %p105 = scmp.eq.s32.totalorder %s22, 0
      %p106 = por %p104, %p105
      %p107 = scmp.ne.s32.totalorder %s95, %s96
      %p108 = scmp.eq.s32.totalorder %s23, 1
      %p109 = por %p107, %p108
      %p111 = scmp.ne.s32.totalorder %s96, %s110
      %p112 = scmp.eq.s32.totalorder %s23, 0
      %p113 = por %p111, %p112
      %s115 = sadd.s32 %s114, 1
      %p118 = scmp.eq.s32.totalorder %s17, 1
      %p119 = scmp.ne.s32.totalorder %s114, %s116
      %p120 = scmp.eq.s32.totalorder %s17, 0
      %p121 = por %p119, %p120
      %p122 = scmp.ne.s32.totalorder %s114, %s116
      %p123 = scmp.eq.s32.totalorder %s22, 1
      %p124 = por %p122, %p123
      %p125 = scmp.ne.s32.totalorder %s116, %s117
      %p126 = scmp.eq.s32.totalorder %s22, 0
      %p127 = por %p125, %p126
      %p128 = scmp.ne.s32.totalorder %s116, %s117
      %p129 = scmp.eq.s32.totalorder %s23, 1
      %p130 = por %p128, %p129
      %p132 = scmp.ne.s32.totalorder %s117, %s131
      %p133 = scmp.eq.s32.totalorder %s23, 0
      %p134 = por %p132, %p133
      %s136 = sadd.s32 %s135, 1
      %p139 = scmp.eq.s32.totalorder %s17, 1
      %p140 = scmp.ne.s32.totalorder %s135, %s137
      %p141 = scmp.eq.s32.totalorder %s17, 0
      %p142 = por %p140, %p141
      %p143 = scmp.ne.s32.totalorder %s135, %s137
      %p144 = scmp.eq.s32.totalorder %s22, 1
      %p145 = por %p143, %p144
      %p146 = scmp.ne.s32.totalorder %s137, %s138
      %p147 = scmp.eq.s32.totalorder %s22, 0
      %p148 = por %p146, %p147
      %p149 = scmp.ne.s32.totalorder %s137, %s138
      %p150 = scmp.eq.s32.totalorder %s23, 1
      %p151 = por %p149, %p150
      %p153 = scmp.ne.s32.totalorder %s138, %s152
      %p154 = scmp.eq.s32.totalorder %s23, 0
      %p155 = por %p153, %p154
      %s157 = sadd.s32 %s156, 1
      %p160 = scmp.eq.s32.totalorder %s17, 1
      %p161 = scmp.ne.s32.totalorder %s156, %s158
      %p162 = scmp.eq.s32.totalorder %s17, 0
      %p163 = por %p161, %p162
      %p164 = scmp.ne.s32.totalorder %s156, %s158
      %p165 = scmp.eq.s32.totalorder %s22, 1
      %p166 = por %p164, %p165
      %p167 = scmp.ne.s32.totalorder %s158, %s159
      %p168 = scmp.eq.s32.totalorder %s22, 0
      %p169 = por %p167, %p168
      %p170 = scmp.ne.s32.totalorder %s158, %s159
      %p171 = scmp.eq.s32.totalorder %s23, 1
      %p172 = por %p170, %p171
      %p174 = scmp.ne.s32.totalorder %s159, %s173
      %p175 = scmp.eq.s32.totalorder %s23, 0
      %p176 = por %p174, %p175
      %s177 = ssub.s32 %s17, %s24
      %p178 = scmp.eq.s32.totalorder %s177, 0
      %s180 = sadd.s32 %s179, 1
      %s181 = scalar_select %p178, %s179, %s180
      %p184 = pneg %p178
      %p185 = scmp.eq.s32.totalorder %s17, 1
      %p186 = por %p184, %p185
      %p187 = scmp.ne.s32.totalorder %s179, %s182
      %p188 = scmp.eq.s32.totalorder %s17, 0
      %p189 = por %p187, %p188
      %p190 = scmp.ne.s32.totalorder %s179, %s182
      %p191 = scmp.eq.s32.totalorder %s22, 1
      %p192 = por %p190, %p191
      %p193 = scmp.ne.s32.totalorder %s182, %s183
      %p194 = scmp.eq.s32.totalorder %s22, 0
      %p195 = por %p193, %p194
      %p196 = scmp.ne.s32.totalorder %s182, %s183
      %p197 = scmp.eq.s32.totalorder %s23, 1
      %p198 = por %p196, %p197
      %p200 = scmp.ne.s32.totalorder %s183, %s199
      %p201 = scmp.eq.s32.totalorder %s23, 0
      %p202 = por %p200, %p201
      %p203 = scmp.le.s32.totalorder 1, %s17
      %p204 = scmp.lt.s32.totalorder %s17, 3
      %p205 = pnand %p203, %p204
      %p206 = pneg %p205
      // Predicated region
      $region9: #{tpu_custom_call.1} parent=5 // pred_check
        _
      $region10: #{tpu_custom_call.1} parent=5 // pred_check_branch
        %208 = sbr.rel (%p205) target = $region12
      $region11: #{tpu_custom_call.1} parent=5 // pred_region
        %s209 = ssub.s32 %s17, 1
        // Predicated region
        $region13: #{tpu_custom_call.1} parent=11 // pred_check
          %p210 = pneg %p64
        $region14: #{tpu_custom_call.1} parent=11 // pred_check_branch
          %212 = sbr.rel (%p210) target = $region16
        $region15: #{tpu_custom_call.1} parent=11 // pred_region
          _
        $region16: #{tpu_custom_call.1} parent=11 // pred_fallthru
          _
        // Predicated region
        $region17: #{tpu_custom_call.1} parent=11 // pred_check
          %p213 = pneg %p85
        $region18: #{tpu_custom_call.1} parent=11 // pred_check_branch
          %215 = sbr.rel (%p213) target = $region20
        $region19: #{tpu_custom_call.1} parent=11 // pred_region
          _
        $region20: #{tpu_custom_call.1} parent=11 // pred_fallthru
          _
        // Predicated region
        $region21: #{tpu_custom_call.1} parent=11 // pred_check
          %p216 = pneg %p106
        $region22: #{tpu_custom_call.1} parent=11 // pred_check_branch
          %218 = sbr.rel (%p216) target = $region24
        $region23: #{tpu_custom_call.1} parent=11 // pred_region
          _
        $region24: #{tpu_custom_call.1} parent=11 // pred_fallthru
          _
        // Predicated region
        $region25: #{tpu_custom_call.1} parent=11 // pred_check
          %p219 = pneg %p127
        $region26: #{tpu_custom_call.1} parent=11 // pred_check_branch
          %221 = sbr.rel (%p219) target = $region28
        $region27: #{tpu_custom_call.1} parent=11 // pred_region
          _
        $region28: #{tpu_custom_call.1} parent=11 // pred_fallthru
          _
        // Predicated region
        $region29: #{tpu_custom_call.1} parent=11 // pred_check
          %p222 = pneg %p148
        $region30: #{tpu_custom_call.1} parent=11 // pred_check_branch
          %224 = sbr.rel (%p222) target = $region32
        $region31: #{tpu_custom_call.1} parent=11 // pred_region
          _
        $region32: #{tpu_custom_call.1} parent=11 // pred_fallthru
          _
        // Predicated region
        $region33: #{tpu_custom_call.1} parent=11 // pred_check
          %p225 = pneg %p169
        $region34: #{tpu_custom_call.1} parent=11 // pred_check_branch
          %227 = sbr.rel (%p225) target = $region36
        $region35: #{tpu_custom_call.1} parent=11 // pred_region
          %s229 = ssub.s32 16, 16
          %230 = vsyncadd [#allocation4], %s229
          %s232 = sshll.u32 %s6, 4
          %s233 = int_to_ptr.vmem [resolvable:$true] %s232
          %235 = dma.vmem_to_smem %s233, 16, [#allocation2], [#allocation4]
        $region36: #{tpu_custom_call.1} parent=11 // pred_fallthru
          _
      $region12: #{tpu_custom_call.1} parent=5 // pred_fallthru
        _
      %p236 = scmp.lt.s32.totalorder %s17, 2
      // Predicated region
      $region37: #{tpu_custom_call.1} parent=5 // pred_check
        %p237 = pneg %p236
      $region38: #{tpu_custom_call.1} parent=5 // pred_check_branch
        %239 = sbr.rel (%p237) target = $region40
      $region39: #{tpu_custom_call.1} parent=5 // pred_region
        // Predicated region
        $region41: #{tpu_custom_call.1} parent=39 // pred_check
          %p240 = pneg %p37
        $region42: #{tpu_custom_call.1} parent=39 // pred_check_branch
          %242 = sbr.rel (%p240) target = $region44
        $region43: #{tpu_custom_call.1} parent=39 // pred_region
          %p243 = scmp.lt.s32.totalorder %s17, 1
          %s244 = scalar_select %p243, %s17, 1
          %s245 = smul.addr %s244, 8
          %s246 = scalar_lea.vmem %s0, %s245
        $region44: #{tpu_custom_call.1} parent=39 // pred_fallthru
          _
      $region40: #{tpu_custom_call.1} parent=5 // pred_fallthru
        _
      %p247 = scmp.le.s32.totalorder 1, %s17
      %p248 = scmp.lt.s32.totalorder %s17, 3
      %p249 = pnand %p247, %p248
      %p250 = pneg %p249
      // Predicated region
      $region45: #{tpu_custom_call.1} parent=5 // pred_check
        _
      $region46: #{tpu_custom_call.1} parent=5 // pred_check_branch
        %252 = sbr.rel (%p249) target = $region48
      $region47: #{tpu_custom_call.1} parent=5 // pred_region
        %s253 = ssub.s32 %s17, 1
        // Predicated region
        $region49: #{tpu_custom_call.1} parent=47 // pred_check
          %p254 = pneg %p169
        $region50: #{tpu_custom_call.1} parent=47 // pred_check_branch
          %256 = sbr.rel (%p254) target = $region52
        $region51: #{tpu_custom_call.1} parent=47 // pred_region
          %257 = dma.done [#allocation4], 16
        $region52: #{tpu_custom_call.1} parent=47 // pred_fallthru
          _
        %258 = sfence
        %p259 = scmp.lt.s32.totalorder %s22, 1
        %s260 = scalar_select %p259, %s22, 1
        %s261 = smul.addr %s260, 8
        %s262 = scalar_lea.vmem %s0, %s261
        %p263 = pneg %p43
        %p264 = pneg %p40
        %p265 = pneg %p64
        %p266 = pneg %p61
        %p267 = pneg %p85
        %p268 = pneg %p82
        %p269 = pneg %p106
        %p270 = pneg %p103
        %p271 = pneg %p127
        %p272 = pneg %p124
        %p273 = pneg %p148
        %p274 = pneg %p145
        %p275 = pneg %p169
        %p276 = pneg %p166
        %p277 = pneg %p195
        %p278 = pneg %p192
        %s279 = sand.u32 %s182, 1
        %s280 = scalar_lea.sflag [#allocation3], %s279
        %s281 = sand.u32 %s182, 1
        %s282 = smul.addr %s281, 8
        %s283 = scalar_lea.vmem [#allocation5], %s282
        %p284 = scmp.lt.s32.totalorder %s22, 1
        %s285 = scalar_select %p284, %s22, 1
        %s286 = smul.addr %s285, 8
        %s287 = scalar_lea.vmem %s0, %s286
        %v289 = vld [vmem:[%s287] sm:$0xff]
        %v290 = vld [vmem:[%s1] sm:$0xf]
        %v291 = vld [vmem:[%s1 + $0x4] sm:$0xf]
        %v292 = vld [vmem:[%s2] sm:$0xff]
        %v293 = vld [vmem:[%s2 + $0x8] sm:$0xff]
        %v294 = vld [vmem:[%s2 + $0x10] sm:$0xff]
        %v295 = vld [vmem:[%s2 + $0x18] sm:$0xff]
        %v296 = vld [vmem:[%s2 + $0x20] sm:$0xff]
        %v297 = vld [vmem:[%s2 + $0x28] sm:$0xff]
        %v298 = vld [vmem:[%s2 + $0x30] sm:$0xff]
        %v299 = vld [vmem:[%s2 + $0x38] sm:$0xff]
        %v300 = vld [vmem:[%s2 + $0x40] sm:$0xff]
        %v301 = vld [vmem:[%s2 + $0x48] sm:$0xff]
        %v302 = vld [vmem:[%s2 + $0x50] sm:$0xff]
        %v303 = vld [vmem:[%s2 + $0x58] sm:$0xff]
        %v304 = vld [vmem:[%s2 + $0x60] sm:$0xff]
        %v305 = vld [vmem:[%s2 + $0x68] sm:$0xff]
        %v306 = vld [vmem:[%s2 + $0x70] sm:$0xff]
        %v307 = vld [vmem:[%s2 + $0x78] sm:$0xff]
        %v308 = vld [vmem:[%s2 + $0x80] sm:$0xff]
        %v309 = vld [vmem:[%s2 + $0x88] sm:$0xff]
        %v310 = vld [vmem:[%s2 + $0x90] sm:$0xff]
        %v311 = vld [vmem:[%s2 + $0x98] sm:$0xff]
        %v312 = vld [vmem:[%s2 + $0xa0] sm:$0xff]
        %v313 = vld [vmem:[%s2 + $0xa8] sm:$0xff]
        %v314 = vld [vmem:[%s2 + $0xb0] sm:$0xff]
        %v315 = vld [vmem:[%s2 + $0xb8] sm:$0xff]
        %v316 = vld [vmem:[%s3] sm:$0xf]
        %v317 = vld [vmem:[%s3 + $0x4] sm:$0xf]
        %v318 = vld [vmem:[%s3 + $0x8] sm:$0xf]
        %v319 = vld [vmem:[%s3 + $0xc] sm:$0xf]
        %v320 = vld [vmem:[%s3 + $0x10] sm:$0xf]
        %v321 = vld [vmem:[%s3 + $0x14] sm:$0xf]
        %v322 = vld [vmem:[%s3 + $0x18] sm:$0xf]
        %v323 = vld [vmem:[%s3 + $0x1c] sm:$0xf]
        %v324 = vld [vmem:[%s3 + $0x20] sm:$0xf]
        %v325 = vld [vmem:[%s3 + $0x24] sm:$0xf]
        %v326 = vld [vmem:[%s3 + $0x28] sm:$0xf]
        %v327 = vld [vmem:[%s3 + $0x2c] sm:$0xf]
        %v328 = vld [vmem:[%s3 + $0x30] sm:$0xf]
        %v329 = vld [vmem:[%s3 + $0x34] sm:$0xf]
        %v330 = vld [vmem:[%s3 + $0x38] sm:$0xf]
        %v331 = vld [vmem:[%s3 + $0x3c] sm:$0xf]
        %v332 = vld [vmem:[%s3 + $0x40] sm:$0xf]
        %v333 = vld [vmem:[%s3 + $0x44] sm:$0xf]
        %v334 = vld [vmem:[%s3 + $0x48] sm:$0xf]
        %v335 = vld [vmem:[%s3 + $0x4c] sm:$0xf]
        %v336 = vld [vmem:[%s3 + $0x50] sm:$0xf]
        %v337 = vld [vmem:[%s3 + $0x54] sm:$0xf]
        %v338 = vld [vmem:[%s3 + $0x58] sm:$0xf]
        %v339 = vld [vmem:[%s3 + $0x5c] sm:$0xf]
        %v340 = vld [vmem:[%s3 + $0x60] sm:$0xf]
        %v341 = vld [vmem:[%s3 + $0x64] sm:$0xf]
        %v342 = vld [vmem:[%s3 + $0x68] sm:$0xf]
        %v343 = vld [vmem:[%s3 + $0x6c] sm:$0xf]
        %v344 = vld [vmem:[%s3 + $0x70] sm:$0xf]
        %v345 = vld [vmem:[%s3 + $0x74] sm:$0xf]
        %v346 = vld [vmem:[%s3 + $0x78] sm:$0xf]
        %v347 = vld [vmem:[%s3 + $0x7c] sm:$0xf]
        %v348 = vld [vmem:[%s3 + $0x80] sm:$0xf]
        %v349 = vld [vmem:[%s3 + $0x84] sm:$0xf]
        %v350 = vld [vmem:[%s3 + $0x88] sm:$0xf]
        %v351 = vld [vmem:[%s3 + $0x8c] sm:$0xf]
        %v352 = vld [vmem:[%s3 + $0x90] sm:$0xf]
        %v353 = vld [vmem:[%s3 + $0x94] sm:$0xf]
        %v354 = vld [vmem:[%s3 + $0x98] sm:$0xf]
        %v355 = vld [vmem:[%s3 + $0x9c] sm:$0xf]
        %v356 = vld [vmem:[%s3 + $0xa0] sm:$0xf]
        %v357 = vld [vmem:[%s3 + $0xa4] sm:$0xf]
        %v358 = vld [vmem:[%s3 + $0xa8] sm:$0xf]
        %v359 = vld [vmem:[%s3 + $0xac] sm:$0xf]
        %v360 = vld [vmem:[%s3 + $0xb0] sm:$0xf]
        %v361 = vld [vmem:[%s3 + $0xb4] sm:$0xf]
        %v362 = vld [vmem:[%s3 + $0xb8] sm:$0xf]
        %v363 = vld [vmem:[%s3 + $0xbc] sm:$0xf]
        %v364 = vld [vmem:[%s3 + $0xc0] sm:$0xf]
        %v365 = vld [vmem:[%s3 + $0xc4] sm:$0xf]
        %v366 = vld [vmem:[%s3 + $0xc8] sm:$0xf]
        %v367 = vld [vmem:[%s3 + $0xcc] sm:$0xf]
        %v368 = vld [vmem:[%s3 + $0xd0] sm:$0xf]
        %v369 = vld [vmem:[%s3 + $0xd4] sm:$0xf]
        %v370 = vld [vmem:[%s3 + $0xd8] sm:$0xf]
        %v371 = vld [vmem:[%s3 + $0xdc] sm:$0xf]
        %v372 = vld [vmem:[%s3 + $0xe0] sm:$0xf]
        %v373 = vld [vmem:[%s3 + $0xe4] sm:$0xf]
        %v374 = vld [vmem:[%s3 + $0xe8] sm:$0xf]
        %v375 = vld [vmem:[%s3 + $0xec] sm:$0xf]
        %v376 = vld [vmem:[%s3 + $0xf0] sm:$0xf]
        %v377 = vld [vmem:[%s3 + $0xf4] sm:$0xf]
        %v378 = vld [vmem:[%s3 + $0xf8] sm:$0xf]
        %v379 = vld [vmem:[%s3 + $0xfc] sm:$0xf]
        %v380 = vpack.c.bf16 %v289, %v289
        %v405 = vunpack.c.l.b16 %v292
        %v406 = vunpack.c.h.b16 %v292
        %v407 = vunpack.c.l.b16 %v293
        %v408 = vunpack.c.h.b16 %v293
        %v409 = vunpack.c.l.b16 %v294
        %v410 = vunpack.c.h.b16 %v294
        %v411 = vunpack.c.l.b16 %v295
        %v412 = vunpack.c.h.b16 %v295
        %v413 = vunpack.c.l.b16 %v296
        %v414 = vunpack.c.h.b16 %v296
        %v415 = vunpack.c.l.b16 %v297
        %v416 = vunpack.c.h.b16 %v297
        %v417 = vunpack.c.l.b16 %v298
        %v418 = vunpack.c.h.b16 %v298
        %v419 = vunpack.c.l.b16 %v299
        %v420 = vunpack.c.h.b16 %v299
        %v421 = vunpack.c.l.b16 %v300
        %v422 = vunpack.c.h.b16 %v300
        %v423 = vunpack.c.l.b16 %v301
        %v424 = vunpack.c.h.b16 %v301
        %v425 = vunpack.c.l.b16 %v302
        %v426 = vunpack.c.h.b16 %v302
        %v427 = vunpack.c.l.b16 %v303
        %v428 = vunpack.c.h.b16 %v303
        %v429 = vunpack.c.l.b16 %v304
        %v430 = vunpack.c.h.b16 %v304
        %v431 = vunpack.c.l.b16 %v305
        %v432 = vunpack.c.h.b16 %v305
        %v433 = vunpack.c.l.b16 %v306
        %v434 = vunpack.c.h.b16 %v306
        %v435 = vunpack.c.l.b16 %v307
        %v436 = vunpack.c.h.b16 %v307
        %v437 = vunpack.c.l.b16 %v308
        %v438 = vunpack.c.h.b16 %v308
        %v439 = vunpack.c.l.b16 %v309
        %v440 = vunpack.c.h.b16 %v309
        %v441 = vunpack.c.l.b16 %v310
        %v442 = vunpack.c.h.b16 %v310
        %v443 = vunpack.c.l.b16 %v311
        %v444 = vunpack.c.h.b16 %v311
        %v445 = vunpack.c.l.b16 %v312
        %v446 = vunpack.c.h.b16 %v312
        %v447 = vunpack.c.l.b16 %v313
        %v448 = vunpack.c.h.b16 %v313
        %v449 = vunpack.c.l.b16 %v314
        %v450 = vunpack.c.h.b16 %v314
        %v451 = vunpack.c.l.b16 %v315
        %v452 = vunpack.c.h.b16 %v315
        %v453 = vpack.c.b16 %v417, %v405
        %v454 = vpack.c.b16 %v418, %v406
        %v455 = vpack.c.b16 %v419, %v407
        %v456 = vpack.c.b16 %v420, %v408
        %v457 = vpack.c.b16 %v421, %v409
        %v458 = vpack.c.b16 %v422, %v410
        %v459 = vpack.c.b16 %v423, %v411
        %v460 = vpack.c.b16 %v424, %v412
        %v461 = vpack.c.b16 %v425, %v413
        %v462 = vpack.c.b16 %v426, %v414
        %v463 = vpack.c.b16 %v427, %v415
        %v464 = vpack.c.b16 %v428, %v416
        %v465 = vpack.c.b16 %v441, %v429
        %v466 = vpack.c.b16 %v442, %v430
        %v467 = vpack.c.b16 %v443, %v431
        %v468 = vpack.c.b16 %v444, %v432
        %v469 = vpack.c.b16 %v445, %v433
        %v470 = vpack.c.b16 %v446, %v434
        %v471 = vpack.c.b16 %v447, %v435
        %v472 = vpack.c.b16 %v448, %v436
        %v473 = vpack.c.b16 %v449, %v437
        %v474 = vpack.c.b16 %v450, %v438
        %v475 = vpack.c.b16 %v451, %v439
        %v476 = vpack.c.b16 %v452, %v440
        %vm501 = vcmask 261120
        %v503 = vsel %vm501, %v380, 0
        %505 = vmatprep.subr.bf16.mxu0 0
        %506 = vmatpush1.bf16.msra.mxu0 0
        %507 = vmatprep.subr.bf16.mxu0 0
        %508 = vmatpush1.bf16.msra.mxu0 0
        %509 = vmatprep.subr.bf16.mxu0 0
        %510 = vmatpush1.bf16.msra.mxu0 0
        %511 = vmatprep.subr.bf16.mxu0 0
        %512 = vmatpush1.bf16.msra.mxu0 0
        %513 = vmatprep.subr.bf16.mxu0 0
        %514 = vmatpush1.bf16.msra.mxu0 0
        %515 = vmatprep.subr.bf16.mxu0 0
        %516 = vmatpush1.bf16.msra.mxu0 0
        %517 = vmatprep.subr.bf16.mxu0 %v466
        %518 = vmatpush1.bf16.msra.mxu0 %v465
        %519 = vmatprep.subr.bf16.mxu0 %v454
        %520 = vmatpush1.bf16.msra.mxu0 %v453
        %521 = vmatprep.subr.bf16.mxu0 0
        %522 = vmatpush2.bf16.msra.mxu0 0
        %523 = vmatprep.subr.bf16.mxu0 0
        %524 = vmatpush2.bf16.msra.mxu0 0
        %525 = vmatprep.subr.bf16.mxu0 0
        %526 = vmatpush2.bf16.msra.mxu0 0
        %527 = vmatprep.subr.bf16.mxu0 0
        %528 = vmatpush2.bf16.msra.mxu0 0
        %529 = vmatprep.subr.bf16.mxu0 0
        %530 = vmatpush2.bf16.msra.mxu0 0
        %531 = vmatprep.subr.bf16.mxu0 0
        %532 = vmatpush2.bf16.msra.mxu0 0
        %533 = vmatprep.subr.bf16.mxu0 0
        %534 = vmatpush2.bf16.msra.mxu0 0
        %535 = vmatprep.subr.bf16.mxu0 0
        %536 = vmatpush2.bf16.msra.mxu0 0
        %537 = vmatprep.mubr.bf16.mxu0 0
        %538 = vmatmul.mubr.bf16.gmra.mxu0 %v503
        %v539 = vpop.f32.mrf.mxu0
        %v540 = vadd.f32 0.0, %v539
        %v541 = vpop.f32.mrf.mxu0
        %v542 = vadd.f32 0.0, %v541
        %v543 = vpop.f32.mrf.mxu0
        %v544 = vpop.f32.mrf.mxu0
        %545 = vdwg.mxu0
        %546 = vmatprep.subr.bf16.mxu0 0
        %547 = vmatpush1.bf16.msra.mxu0 0
        %548 = vmatprep.subr.bf16.mxu0 0
        %549 = vmatpush1.bf16.msra.mxu0 0
        %550 = vmatprep.subr.bf16.mxu0 0
        %551 = vmatpush1.bf16.msra.mxu0 0
        %552 = vmatprep.subr.bf16.mxu0 0
        %553 = vmatpush1.bf16.msra.mxu0 0
        %554 = vmatprep.subr.bf16.mxu0 0
        %555 = vmatpush1.bf16.msra.mxu0 0
        %556 = vmatprep.subr.bf16.mxu0 0
        %557 = vmatpush1.bf16.msra.mxu0 0
        %558 = vmatprep.subr.bf16.mxu0 %v468
        %559 = vmatpush1.bf16.msra.mxu0 %v467
        %560 = vmatprep.subr.bf16.mxu0 %v456
        %561 = vmatpush1.bf16.msra.mxu0 %v455
        %562 = vmatprep.subr.bf16.mxu0 0
        %563 = vmatpush2.bf16.msra.mxu0 0
        %564 = vmatprep.subr.bf16.mxu0 0
        %565 = vmatpush2.bf16.msra.mxu0 0
        %566 = vmatprep.subr.bf16.mxu0 0
        %567 = vmatpush2.bf16.msra.mxu0 0
        %568 = vmatprep.subr.bf16.mxu0 0
        %569 = vmatpush2.bf16.msra.mxu0 0
        %570 = vmatprep.subr.bf16.mxu0 0
        %571 = vmatpush2.bf16.msra.mxu0 0
        %572 = vmatprep.subr.bf16.mxu0 0
        %573 = vmatpush2.bf16.msra.mxu0 0
        %574 = vmatprep.subr.bf16.mxu0 0
        %575 = vmatpush2.bf16.msra.mxu0 0
        %576 = vmatprep.subr.bf16.mxu0 0
        %577 = vmatpush2.bf16.msra.mxu0 0
        %578 = vmatprep.mubr.bf16.mxu0 0
        %579 = vmatmul.mubr.bf16.gmra.mxu0 %v503
        %v580 = vpop.f32.mrf.mxu0
        %v581 = vadd.f32 0.0, %v580
        %v582 = vpop.f32.mrf.mxu0
        %v583 = vadd.f32 0.0, %v582
        %v584 = vpop.f32.mrf.mxu0
        %v585 = vpop.f32.mrf.mxu0
        %586 = vdwg.mxu0
        %587 = vmatprep.subr.bf16.mxu0 0
        %588 = vmatpush1.bf16.msra.mxu0 0
        %589 = vmatprep.subr.bf16.mxu0 0
        %590 = vmatpush1.bf16.msra.mxu0 0
        %591 = vmatprep.subr.bf16.mxu0 0
        %592 = vmatpush1.bf16.msra.mxu0 0
        %593 = vmatprep.subr.bf16.mxu0 0
        %594 = vmatpush1.bf16.msra.mxu0 0
        %595 = vmatprep.subr.bf16.mxu0 0
        %596 = vmatpush1.bf16.msra.mxu0 0
        %597 = vmatprep.subr.bf16.mxu0 0
        %598 = vmatpush1.bf16.msra.mxu0 0
        %599 = vmatprep.subr.bf16.mxu0 %v470
        %600 = vmatpush1.bf16.msra.mxu0 %v469
        %601 = vmatprep.subr.bf16.mxu0 %v458
        %602 = vmatpush1.bf16.msra.mxu0 %v457
        %603 = vmatprep.subr.bf16.mxu0 0
        %604 = vmatpush2.bf16.msra.mxu0 0
        %605 = vmatprep.subr.bf16.mxu0 0
        %606 = vmatpush2.bf16.msra.mxu0 0
        %607 = vmatprep.subr.bf16.mxu0 0
        %608 = vmatpush2.bf16.msra.mxu0 0
        %609 = vmatprep.subr.bf16.mxu0 0
        %610 = vmatpush2.bf16.msra.mxu0 0
        %611 = vmatprep.subr.bf16.mxu0 0
        %612 = vmatpush2.bf16.msra.mxu0 0
        %613 = vmatprep.subr.bf16.mxu0 0
        %614 = vmatpush2.bf16.msra.mxu0 0
        %615 = vmatprep.subr.bf16.mxu0 0
        %616 = vmatpush2.bf16.msra.mxu0 0
        %617 = vmatprep.subr.bf16.mxu0 0
        %618 = vmatpush2.bf16.msra.mxu0 0
        %619 = vmatprep.mubr.bf16.mxu0 0
        %620 = vmatmul.mubr.bf16.gmra.mxu0 %v503
        %v621 = vpop.f32.mrf.mxu0
        %v622 = vadd.f32 0.0, %v621
        %v623 = vpop.f32.mrf.mxu0
        %v624 = vadd.f32 0.0, %v623
        %v625 = vpop.f32.mrf.mxu0
        %v626 = vpop.f32.mrf.mxu0
        %627 = vdwg.mxu0
        %628 = vmatprep.subr.bf16.mxu0 0
        %629 = vmatpush1.bf16.msra.mxu0 0
        %630 = vmatprep.subr.bf16.mxu0 0
        %631 = vmatpush1.bf16.msra.mxu0 0
        %632 = vmatprep.subr.bf16.mxu0 0
        %633 = vmatpush1.bf16.msra.mxu0 0
        %634 = vmatprep.subr.bf16.mxu0 0
        %635 = vmatpush1.bf16.msra.mxu0 0
        %636 = vmatprep.subr.bf16.mxu0 0
        %637 = vmatpush1.bf16.msra.mxu0 0
        %638 = vmatprep.subr.bf16.mxu0 0
        %639 = vmatpush1.bf16.msra.mxu0 0
        %640 = vmatprep.subr.bf16.mxu0 %v472
        %641 = vmatpush1.bf16.msra.mxu0 %v471
        %642 = vmatprep.subr.bf16.mxu0 %v460
        %643 = vmatpush1.bf16.msra.mxu0 %v459
        %644 = vmatprep.subr.bf16.mxu0 0
        %645 = vmatpush2.bf16.msra.mxu0 0
        %646 = vmatprep.subr.bf16.mxu0 0
        %647 = vmatpush2.bf16.msra.mxu0 0
        %648 = vmatprep.subr.bf16.mxu0 0
        %649 = vmatpush2.bf16.msra.mxu0 0
        %650 = vmatprep.subr.bf16.mxu0 0
        %651 = vmatpush2.bf16.msra.mxu0 0
        %652 = vmatprep.subr.bf16.mxu0 0
        %653 = vmatpush2.bf16.msra.mxu0 0
        %654 = vmatprep.subr.bf16.mxu0 0
        %655 = vmatpush2.bf16.msra.mxu0 0
        %656 = vmatprep.subr.bf16.mxu0 0
        %657 = vmatpush2.bf16.msra.mxu0 0
        %658 = vmatprep.subr.bf16.mxu0 0
        %659 = vmatpush2.bf16.msra.mxu0 0
        %660 = vmatprep.mubr.bf16.mxu0 0
        %661 = vmatmul.mubr.bf16.gmra.mxu0 %v503
        %v662 = vpop.f32.mrf.mxu0
        %v663 = vadd.f32 0.0, %v662
        %v664 = vpop.f32.mrf.mxu0
        %v665 = vadd.f32 0.0, %v664
        %v666 = vpop.f32.mrf.mxu0
        %v667 = vpop.f32.mrf.mxu0
        %668 = vdwg.mxu0
        %669 = vmatprep.subr.bf16.mxu0 0
        %670 = vmatpush1.bf16.msra.mxu0 0
        %671 = vmatprep.subr.bf16.mxu0 0
        %672 = vmatpush1.bf16.msra.mxu0 0
        %673 = vmatprep.subr.bf16.mxu0 0
        %674 = vmatpush1.bf16.msra.mxu0 0
        %675 = vmatprep.subr.bf16.mxu0 0
        %676 = vmatpush1.bf16.msra.mxu0 0
        %677 = vmatprep.subr.bf16.mxu0 0
        %678 = vmatpush1.bf16.msra.mxu0 0
        %679 = vmatprep.subr.bf16.mxu0 0
        %680 = vmatpush1.bf16.msra.mxu0 0
        %681 = vmatprep.subr.bf16.mxu0 %v474
        %682 = vmatpush1.bf16.msra.mxu0 %v473
        %683 = vmatprep.subr.bf16.mxu0 %v462
        %684 = vmatpush1.bf16.msra.mxu0 %v461
        %685 = vmatprep.subr.bf16.mxu0 0
        %686 = vmatpush2.bf16.msra.mxu0 0
        %687 = vmatprep.subr.bf16.mxu0 0
        %688 = vmatpush2.bf16.msra.mxu0 0
        %689 = vmatprep.subr.bf16.mxu0 0
        %690 = vmatpush2.bf16.msra.mxu0 0
        %691 = vmatprep.subr.bf16.mxu0 0
        %692 = vmatpush2.bf16.msra.mxu0 0
        %693 = vmatprep.subr.bf16.mxu0 0
        %694 = vmatpush2.bf16.msra.mxu0 0
        %695 = vmatprep.subr.bf16.mxu0 0
        %696 = vmatpush2.bf16.msra.mxu0 0
        %697 = vmatprep.subr.bf16.mxu0 0
        %698 = vmatpush2.bf16.msra.mxu0 0
        %699 = vmatprep.subr.bf16.mxu0 0
        %700 = vmatpush2.bf16.msra.mxu0 0
        %701 = vmatprep.mubr.bf16.mxu0 0
        %702 = vmatmul.mubr.bf16.gmra.mxu0 %v503
        %v703 = vpop.f32.mrf.mxu0
        %v704 = vadd.f32 0.0, %v703
        %v705 = vpop.f32.mrf.mxu0
        %v706 = vadd.f32 0.0, %v705
        %v707 = vpop.f32.mrf.mxu0
        %v708 = vpop.f32.mrf.mxu0
        %709 = vdwg.mxu0
        %710 = vmatprep.subr.bf16.mxu0 0
        %711 = vmatpush1.bf16.msra.mxu0 0
        %712 = vmatprep.subr.bf16.mxu0 0
        %713 = vmatpush1.bf16.msra.mxu0 0
        %714 = vmatprep.subr.bf16.mxu0 0
        %715 = vmatpush1.bf16.msra.mxu0 0
        %716 = vmatprep.subr.bf16.mxu0 0
        %717 = vmatpush1.bf16.msra.mxu0 0
        %718 = vmatprep.subr.bf16.mxu0 0
        %719 = vmatpush1.bf16.msra.mxu0 0
        %720 = vmatprep.subr.bf16.mxu0 0
        %721 = vmatpush1.bf16.msra.mxu0 0
        %722 = vmatprep.subr.bf16.mxu0 %v476
        %723 = vmatpush1.bf16.msra.mxu0 %v475
        %724 = vmatprep.subr.bf16.mxu0 %v464
        %725 = vmatpush1.bf16.msra.mxu0 %v463
        %726 = vmatprep.subr.bf16.mxu0 0
        %727 = vmatpush2.bf16.msra.mxu0 0
        %728 = vmatprep.subr.bf16.mxu0 0
        %729 = vmatpush2.bf16.msra.mxu0 0
        %730 = vmatprep.subr.bf16.mxu0 0
        %731 = vmatpush2.bf16.msra.mxu0 0
        %732 = vmatprep.subr.bf16.mxu0 0
        %733 = vmatpush2.bf16.msra.mxu0 0
        %734 = vmatprep.subr.bf16.mxu0 0
        %735 = vmatpush2.bf16.msra.mxu0 0
        %736 = vmatprep.subr.bf16.mxu0 0
        %737 = vmatpush2.bf16.msra.mxu0 0
        %738 = vmatprep.subr.bf16.mxu0 0
        %739 = vmatpush2.bf16.msra.mxu0 0
        %740 = vmatprep.subr.bf16.mxu0 0
        %741 = vmatpush2.bf16.msra.mxu0 0
        %742 = vmatprep.mubr.bf16.mxu0 0
        %743 = vmatmul.mubr.bf16.gmra.mxu0 %v503
        %v744 = vpop.f32.mrf.mxu0
        %v745 = vadd.f32 0.0, %v744
        %v746 = vpop.f32.mrf.mxu0
        %v747 = vadd.f32 0.0, %v746
        %v748 = vpop.f32.mrf.mxu0
        %v749 = vpop.f32.mrf.mxu0
        %750 = vdwg.mxu0
        %v751 = vpack.c.bf16 %v540, %v540
        %v752 = vpack.c.bf16 %v542, %v542
        %v753 = vpack.c.bf16 %v581, %v581
        %v754 = vpack.c.bf16 %v583, %v583
        %v755 = vpack.c.bf16 %v622, %v622
        %v756 = vpack.c.bf16 %v624, %v624
        %v757 = vpack.c.bf16 %v663, %v663
        %v758 = vpack.c.bf16 %v665, %v665
        %v759 = vpack.c.bf16 %v704, %v704
        %v760 = vpack.c.bf16 %v706, %v706
        %v761 = vpack.c.bf16 %v745, %v745
        %v762 = vpack.c.bf16 %v747, %v747
        %763 = vmatprep.subr.bf16.mxu0 0
        %764 = vmatpush1.bf16.xpose.msra.mxu0 0
        %765 = vmatprep.subr.bf16.mxu0 0
        %766 = vmatpush1.bf16.xpose.msra.mxu0 0
        %767 = vmatprep.subr.bf16.mxu0 0
        %768 = vmatpush1.bf16.xpose.msra.mxu0 0
        %769 = vmatprep.subr.bf16.mxu0 0
        %770 = vmatpush1.bf16.xpose.msra.mxu0 0
        %771 = vmatprep.subr.bf16.mxu0 0
        %772 = vmatpush1.bf16.xpose.msra.mxu0 0
        %773 = vmatprep.subr.bf16.mxu0 0
        %774 = vmatpush1.bf16.xpose.msra.mxu0 0
        %775 = vmatprep.subr.bf16.mxu0 0
        %776 = vmatpush1.bf16.xpose.msra.mxu0 0
        %777 = vmatprep.subr.bf16.mxu0 0
        %778 = vmatpush1.bf16.xpose.msra.mxu0 %v755
        %779 = vmatprep.subr.bf16.mxu0 0
        %780 = vmatpush2.bf16.xpose.msra.mxu0 0
        %781 = vmatprep.subr.bf16.mxu0 0
        %782 = vmatpush2.bf16.xpose.msra.mxu0 0
        %783 = vmatprep.subr.bf16.mxu0 0
        %784 = vmatpush2.bf16.xpose.msra.mxu0 0
        %785 = vmatprep.subr.bf16.mxu0 0
        %786 = vmatpush2.bf16.xpose.msra.mxu0 0
        %787 = vmatprep.subr.bf16.mxu0 0
        %788 = vmatpush2.bf16.xpose.msra.mxu0 0
        %789 = vmatprep.subr.bf16.mxu0 0
        %790 = vmatpush2.bf16.xpose.msra.mxu0 0
        %791 = vmatprep.subr.bf16.mxu0 0
        %792 = vmatpush2.bf16.xpose.msra.mxu0 0
        %793 = vmatprep.subr.bf16.mxu0 0
        %794 = vmatpush2.bf16.xpose.msra.mxu0 0
        %795 = vmatprep.mubr.bf16.mxu0 0
        %796 = vmatmul.mubr.bf16.gmra.mxu0 %v751
        %v797 = vpop.f32.mrf.mxu0
        %v798 = vadd.f32 0.0, %v797
        %v799 = vpop.f32.mrf.mxu0
        %v800 = vpop.f32.mrf.mxu0
        %v801 = vpop.f32.mrf.mxu0
        %802 = vdwg.mxu0
        %vm803 = vcmask 64512
        %v804 = vsel %vm803, %v798, -inf
        %805 = vmax.xlane.f32.xlu0 %v804
        %v806 = vpop.xlane.xlu0 %805
        %v807 = vsub.f32 %v798, %v806
        %v808 = vmul.f32 %v807, 1.442695
        %v809 = vpow.pop %v808
        %v810 = vsel %vm803, %v809, 0.0
        %811 = vadd.xlane.f32.xlu0 %v810
        %v812 = vpop.xlane.xlu0 %811
        %v813 = vrcp.pop %v812
        %v814 = vmul.f32 %v809, %v813
        %v815 = vpack.c.bf16 %v814, %v814
        %v817 = vsel %vm803, %v815, 0
        %vm819 = vcmask 1043456
        %v821 = vsel %vm819, %v759, 0
        %823 = vmatprep.subr.bf16.mxu0 0
        %824 = vmatpush1.bf16.msra.mxu0 0
        %825 = vmatprep.subr.bf16.mxu0 0
        %826 = vmatpush1.bf16.msra.mxu0 0
        %827 = vmatprep.subr.bf16.mxu0 0
        %828 = vmatpush1.bf16.msra.mxu0 0
        %829 = vmatprep.subr.bf16.mxu0 0
        %830 = vmatpush1.bf16.msra.mxu0 0
        %831 = vmatprep.subr.bf16.mxu0 0
        %832 = vmatpush1.bf16.msra.mxu0 0
        %833 = vmatprep.subr.bf16.mxu0 0
        %834 = vmatpush1.bf16.msra.mxu0 0
        %835 = vmatprep.subr.bf16.mxu0 0
        %836 = vmatpush1.bf16.msra.mxu0 0
        %837 = vmatprep.subr.bf16.mxu0 0
        %838 = vmatpush1.bf16.msra.mxu0 %v821
        %839 = vmatprep.subr.bf16.mxu0 0
        %840 = vmatpush2.bf16.msra.mxu0 0
        %841 = vmatprep.subr.bf16.mxu0 0
        %842 = vmatpush2.bf16.msra.mxu0 0
        %843 = vmatprep.subr.bf16.mxu0 0
        %844 = vmatpush2.bf16.msra.mxu0 0
        %845 = vmatprep.subr.bf16.mxu0 0
        %846 = vmatpush2.bf16.msra.mxu0 0
        %847 = vmatprep.subr.bf16.mxu0 0
        %848 = vmatpush2.bf16.msra.mxu0 0
        %849 = vmatprep.subr.bf16.mxu0 0
        %850 = vmatpush2.bf16.msra.mxu0 0
        %851 = vmatprep.subr.bf16.mxu0 0
        %852 = vmatpush2.bf16.msra.mxu0 0
        %853 = vmatprep.subr.bf16.mxu0 0
        %854 = vmatpush2.bf16.msra.mxu0 0
        %855 = vmatprep.mubr.bf16.mxu0 0
        %856 = vmatmul.mubr.bf16.gmra.mxu0 %v817
        %v857 = vpop.f32.mrf.mxu0
        %v858 = vadd.f32 0.0, %v857
        %v859 = vpop.f32.mrf.mxu0
        %v860 = vpop.f32.mrf.mxu0
        %v861 = vpop.f32.mrf.mxu0
        %862 = vdwg.mxu0
        %863 = vmatprep.subr.bf16.mxu0 0
        %864 = vmatpush1.bf16.xpose.msra.mxu0 0
        %865 = vmatprep.subr.bf16.mxu0 0
        %866 = vmatpush1.bf16.xpose.msra.mxu0 0
        %867 = vmatprep.subr.bf16.mxu0 0
        %868 = vmatpush1.bf16.xpose.msra.mxu0 0
        %869 = vmatprep.subr.bf16.mxu0 0
        %870 = vmatpush1.bf16.xpose.msra.mxu0 0
        %871 = vmatprep.subr.bf16.mxu0 0
        %872 = vmatpush1.bf16.xpose.msra.mxu0 0
        %873 = vmatprep.subr.bf16.mxu0 0
        %874 = vmatpush1.bf16.xpose.msra.mxu0 0
        %875 = vmatprep.subr.bf16.mxu0 0
        %876 = vmatpush1.bf16.xpose.msra.mxu0 0
        %877 = vmatprep.subr.bf16.mxu0 0
        %878 = vmatpush1.bf16.xpose.msra.mxu0 %v756
        %879 = vmatprep.subr.bf16.mxu0 0
        %880 = vmatpush2.bf16.xpose.msra.mxu0 0
        %881 = vmatprep.subr.bf16.mxu0 0
        %882 = vmatpush2.bf16.xpose.msra.mxu0 0
        %883 = vmatprep.subr.bf16.mxu0 0
        %884 = vmatpush2.bf16.xpose.msra.mxu0 0
        %885 = vmatprep.subr.bf16.mxu0 0
        %886 = vmatpush2.bf16.xpose.msra.mxu0 0
        %887 = vmatprep.subr.bf16.mxu0 0
        %888 = vmatpush2.bf16.xpose.msra.mxu0 0
        %889 = vmatprep.subr.bf16.mxu0 0
        %890 = vmatpush2.bf16.xpose.msra.mxu0 0
        %891 = vmatprep.subr.bf16.mxu0 0
        %892 = vmatpush2.bf16.xpose.msra.mxu0 0
        %893 = vmatprep.subr.bf16.mxu0 0
        %894 = vmatpush2.bf16.xpose.msra.mxu0 0
        %895 = vmatprep.mubr.bf16.mxu0 0
        %896 = vmatmul.mubr.bf16.gmra.mxu0 %v752
        %v897 = vpop.f32.mrf.mxu0
        %v898 = vadd.f32 0.0, %v897
        %v899 = vpop.f32.mrf.mxu0
        %v900 = vpop.f32.mrf.mxu0
        %v901 = vpop.f32.mrf.mxu0
        %902 = vdwg.mxu0
        %v903 = vsel %vm803, %v898, -inf
        %904 = vmax.xlane.f32.xlu0 %v903
        %v905 = vpop.xlane.xlu0 %904
        %v906 = vsub.f32 %v898, %v905
        %v907 = vmul.f32 %v906, 1.442695
        %v908 = vpow.pop %v907
        %v909 = vsel %vm803, %v908, 0.0
        %910 = vadd.xlane.f32.xlu0 %v909
        %v911 = vpop.xlane.xlu0 %910
        %v912 = vrcp.pop %v911
        %v913 = vmul.f32 %v908, %v912
        %v914 = vpack.c.bf16 %v913, %v913
        %v916 = vsel %vm803, %v914, 0
        %v919 = vsel %vm819, %v760, 0
        %921 = vmatprep.subr.bf16.mxu0 0
        %922 = vmatpush1.bf16.msra.mxu0 0
        %923 = vmatprep.subr.bf16.mxu0 0
        %924 = vmatpush1.bf16.msra.mxu0 0
        %925 = vmatprep.subr.bf16.mxu0 0
        %926 = vmatpush1.bf16.msra.mxu0 0
        %927 = vmatprep.subr.bf16.mxu0 0
        %928 = vmatpush1.bf16.msra.mxu0 0
        %929 = vmatprep.subr.bf16.mxu0 0
        %930 = vmatpush1.bf16.msra.mxu0 0
        %931 = vmatprep.subr.bf16.mxu0 0
        %932 = vmatpush1.bf16.msra.mxu0 0
        %933 = vmatprep.subr.bf16.mxu0 0
        %934 = vmatpush1.bf16.msra.mxu0 0
        %935 = vmatprep.subr.bf16.mxu0 0
        %936 = vmatpush1.bf16.msra.mxu0 %v919
        %937 = vmatprep.subr.bf16.mxu0 0
        %938 = vmatpush2.bf16.msra.mxu0 0
        %939 = vmatprep.subr.bf16.mxu0 0
        %940 = vmatpush2.bf16.msra.mxu0 0
        %941 = vmatprep.subr.bf16.mxu0 0
        %942 = vmatpush2.bf16.msra.mxu0 0
        %943 = vmatprep.subr.bf16.mxu0 0
        %944 = vmatpush2.bf16.msra.mxu0 0
        %945 = vmatprep.subr.bf16.mxu0 0
        %946 = vmatpush2.bf16.msra.mxu0 0
        %947 = vmatprep.subr.bf16.mxu0 0
        %948 = vmatpush2.bf16.msra.mxu0 0
        %949 = vmatprep.subr.bf16.mxu0 0
        %950 = vmatpush2.bf16.msra.mxu0 0
        %951 = vmatprep.subr.bf16.mxu0 0
        %952 = vmatpush2.bf16.msra.mxu0 0
        %953 = vmatprep.mubr.bf16.mxu0 0
        %954 = vmatmul.mubr.bf16.gmra.mxu0 %v916
        %v955 = vpop.f32.mrf.mxu0
        %v956 = vadd.f32 0.0, %v955
        %v957 = vpop.f32.mrf.mxu0
        %v958 = vpop.f32.mrf.mxu0
        %v959 = vpop.f32.mrf.mxu0
        %960 = vdwg.mxu0
        %961 = vmatprep.subr.bf16.mxu0 0
        %962 = vmatpush1.bf16.xpose.msra.mxu0 0
        %963 = vmatprep.subr.bf16.mxu0 0
        %964 = vmatpush1.bf16.xpose.msra.mxu0 0
        %965 = vmatprep.subr.bf16.mxu0 0
        %966 = vmatpush1.bf16.xpose.msra.mxu0 0
        %967 = vmatprep.subr.bf16.mxu0 0
        %968 = vmatpush1.bf16.xpose.msra.mxu0 0
        %969 = vmatprep.subr.bf16.mxu0 0
        %970 = vmatpush1.bf16.xpose.msra.mxu0 0
        %971 = vmatprep.subr.bf16.mxu0 0
        %972 = vmatpush1.bf16.xpose.msra.mxu0 0
        %973 = vmatprep.subr.bf16.mxu0 0
        %974 = vmatpush1.bf16.xpose.msra.mxu0 0
        %975 = vmatprep.subr.bf16.mxu0 0
        %976 = vmatpush1.bf16.xpose.msra.mxu0 %v757
        %977 = vmatprep.subr.bf16.mxu0 0
        %978 = vmatpush2.bf16.xpose.msra.mxu0 0
        %979 = vmatprep.subr.bf16.mxu0 0
        %980 = vmatpush2.bf16.xpose.msra.mxu0 0
        %981 = vmatprep.subr.bf16.mxu0 0
        %982 = vmatpush2.bf16.xpose.msra.mxu0 0
        %983 = vmatprep.subr.bf16.mxu0 0
        %984 = vmatpush2.bf16.xpose.msra.mxu0 0
        %985 = vmatprep.subr.bf16.mxu0 0
        %986 = vmatpush2.bf16.xpose.msra.mxu0 0
        %987 = vmatprep.subr.bf16.mxu0 0
        %988 = vmatpush2.bf16.xpose.msra.mxu0 0
        %989 = vmatprep.subr.bf16.mxu0 0
        %990 = vmatpush2.bf16.xpose.msra.mxu0 0
        %991 = vmatprep.subr.bf16.mxu0 0
        %992 = vmatpush2.bf16.xpose.msra.mxu0 0
        %993 = vmatprep.mubr.bf16.mxu0 0
        %994 = vmatmul.mubr.bf16.gmra.mxu0 %v753
        %v995 = vpop.f32.mrf.mxu0
        %v996 = vadd.f32 0.0, %v995
        %v997 = vpop.f32.mrf.mxu0
        %v998 = vpop.f32.mrf.mxu0
        %v999 = vpop.f32.mrf.mxu0
        %1000 = vdwg.mxu0
        %v1001 = vsel %vm803, %v996, -inf
        %1002 = vmax.xlane.f32.xlu0 %v1001
        %v1003 = vpop.xlane.xlu0 %1002
        %v1004 = vsub.f32 %v996, %v1003
        %v1005 = vmul.f32 %v1004, 1.442695
        %v1006 = vpow.pop %v1005
        %v1007 = vsel %vm803, %v1006, 0.0
        %1008 = vadd.xlane.f32.xlu0 %v1007
        %v1009 = vpop.xlane.xlu0 %1008
        %v1010 = vrcp.pop %v1009
        %v1011 = vmul.f32 %v1006, %v1010
        %v1012 = vpack.c.bf16 %v1011, %v1011
        %v1014 = vsel %vm803, %v1012, 0
        %v1017 = vsel %vm819, %v761, 0
        %1019 = vmatprep.subr.bf16.mxu0 0
        %1020 = vmatpush1.bf16.msra.mxu0 0
        %1021 = vmatprep.subr.bf16.mxu0 0
        %1022 = vmatpush1.bf16.msra.mxu0 0
        %1023 = vmatprep.subr.bf16.mxu0 0
        %1024 = vmatpush1.bf16.msra.mxu0 0
        %1025 = vmatprep.subr.bf16.mxu0 0
        %1026 = vmatpush1.bf16.msra.mxu0 0
        %1027 = vmatprep.subr.bf16.mxu0 0
        %1028 = vmatpush1.bf16.msra.mxu0 0
        %1029 = vmatprep.subr.bf16.mxu0 0
        %1030 = vmatpush1.bf16.msra.mxu0 0
        %1031 = vmatprep.subr.bf16.mxu0 0
        %1032 = vmatpush1.bf16.msra.mxu0 0
        %1033 = vmatprep.subr.bf16.mxu0 0
        %1034 = vmatpush1.bf16.msra.mxu0 %v1017
        %1035 = vmatprep.subr.bf16.mxu0 0
        %1036 = vmatpush2.bf16.msra.mxu0 0
        %1037 = vmatprep.subr.bf16.mxu0 0
        %1038 = vmatpush2.bf16.msra.mxu0 0
        %1039 = vmatprep.subr.bf16.mxu0 0
        %1040 = vmatpush2.bf16.msra.mxu0 0
        %1041 = vmatprep.subr.bf16.mxu0 0
        %1042 = vmatpush2.bf16.msra.mxu0 0
        %1043 = vmatprep.subr.bf16.mxu0 0
        %1044 = vmatpush2.bf16.msra.mxu0 0
        %1045 = vmatprep.subr.bf16.mxu0 0
        %1046 = vmatpush2.bf16.msra.mxu0 0
        %1047 = vmatprep.subr.bf16.mxu0 0
        %1048 = vmatpush2.bf16.msra.mxu0 0
        %1049 = vmatprep.subr.bf16.mxu0 0
        %1050 = vmatpush2.bf16.msra.mxu0 0
        %1051 = vmatprep.mubr.bf16.mxu0 0
        %1052 = vmatmul.mubr.bf16.gmra.mxu0 %v1014
        %v1053 = vpop.f32.mrf.mxu0
        %v1054 = vadd.f32 0.0, %v1053
        %v1055 = vpop.f32.mrf.mxu0
        %v1056 = vpop.f32.mrf.mxu0
        %v1057 = vpop.f32.mrf.mxu0
        %1058 = vdwg.mxu0
        %1059 = vmatprep.subr.bf16.mxu0 0
        %1060 = vmatpush1.bf16.xpose.msra.mxu0 0
        %1061 = vmatprep.subr.bf16.mxu0 0
        %1062 = vmatpush1.bf16.xpose.msra.mxu0 0
        %1063 = vmatprep.subr.bf16.mxu0 0
        %1064 = vmatpush1.bf16.xpose.msra.mxu0 0
        %1065 = vmatprep.subr.bf16.mxu0 0
        %1066 = vmatpush1.bf16.xpose.msra.mxu0 0
        %1067 = vmatprep.subr.bf16.mxu0 0
        %1068 = vmatpush1.bf16.xpose.msra.mxu0 0
        %1069 = vmatprep.subr.bf16.mxu0 0
        %1070 = vmatpush1.bf16.xpose.msra.mxu0 0
        %1071 = vmatprep.subr.bf16.mxu0 0
        %1072 = vmatpush1.bf16.xpose.msra.mxu0 0
        %1073 = vmatprep.subr.bf16.mxu0 0
        %1074 = vmatpush1.bf16.xpose.msra.mxu0 %v758
        %1075 = vmatprep.subr.bf16.mxu0 0
        %1076 = vmatpush2.bf16.xpose.msra.mxu0 0
        %1077 = vmatprep.subr.bf16.mxu0 0
        %1078 = vmatpush2.bf16.xpose.msra.mxu0 0
        %1079 = vmatprep.subr.bf16.mxu0 0
        %1080 = vmatpush2.bf16.xpose.msra.mxu0 0
        %1081 = vmatprep.subr.bf16.mxu0 0
        %1082 = vmatpush2.bf16.xpose.msra.mxu0 0
        %1083 = vmatprep.subr.bf16.mxu0 0
        %1084 = vmatpush2.bf16.xpose.msra.mxu0 0
        %1085 = vmatprep.subr.bf16.mxu0 0
        %1086 = vmatpush2.bf16.xpose.msra.mxu0 0
        %1087 = vmatprep.subr.bf16.mxu0 0
        %1088 = vmatpush2.bf16.xpose.msra.mxu0 0
        %1089 = vmatprep.subr.bf16.mxu0 0
        %1090 = vmatpush2.bf16.xpose.msra.mxu0 0
        %1091 = vmatprep.mubr.bf16.mxu0 0
        %1092 = vmatmul.mubr.bf16.gmra.mxu0 %v754
        %v1093 = vpop.f32.mrf.mxu0
        %v1094 = vadd.f32 0.0, %v1093
        %v1095 = vpop.f32.mrf.mxu0
        %v1096 = vpop.f32.mrf.mxu0
        %v1097 = vpop.f32.mrf.mxu0
        %1098 = vdwg.mxu0
        %v1099 = vsel %vm803, %v1094, -inf
        %1100 = vmax.xlane.f32.xlu0 %v1099
        %v1101 = vpop.xlane.xlu0 %1100
        %v1102 = vsub.f32 %v1094, %v1101
        %v1103 = vmul.f32 %v1102, 1.442695
        %v1104 = vpow.pop %v1103
        %v1105 = vsel %vm803, %v1104, 0.0
        %1106 = vadd.xlane.f32.xlu0 %v1105
        %v1107 = vpop.xlane.xlu0 %1106
        %v1108 = vrcp.pop %v1107
        %v1109 = vmul.f32 %v1104, %v1108
        %v1110 = vpack.c.bf16 %v1109, %v1109
        %v1112 = vsel %vm803, %v1110, 0
        %v1115 = vsel %vm819, %v762, 0
        %1117 = vmatprep.subr.bf16.mxu0 0
        %1118 = vmatpush1.bf16.msra.mxu0 0
        %1119 = vmatprep.subr.bf16.mxu0 0
        %1120 = vmatpush1.bf16.msra.mxu0 0
        %1121 = vmatprep.subr.bf16.mxu0 0
        %1122 = vmatpush1.bf16.msra.mxu0 0
        %1123 = vmatprep.subr.bf16.mxu0 0
        %1124 = vmatpush1.bf16.msra.mxu0 0
        %1125 = vmatprep.subr.bf16.mxu0 0
        %1126 = vmatpush1.bf16.msra.mxu0 0
        %1127 = vmatprep.subr.bf16.mxu0 0
        %1128 = vmatpush1.bf16.msra.mxu0 0
        %1129 = vmatprep.subr.bf16.mxu0 0
        %1130 = vmatpush1.bf16.msra.mxu0 0
        %1131 = vmatprep.subr.bf16.mxu0 0
        %1132 = vmatpush1.bf16.msra.mxu0 %v1115
        %1133 = vmatprep.subr.bf16.mxu0 0
        %1134 = vmatpush2.bf16.msra.mxu0 0
        %1135 = vmatprep.subr.bf16.mxu0 0
        %1136 = vmatpush2.bf16.msra.mxu0 0
        %1137 = vmatprep.subr.bf16.mxu0 0
        %1138 = vmatpush2.bf16.msra.mxu0 0
        %1139 = vmatprep.subr.bf16.mxu0 0
        %1140 = vmatpush2.bf16.msra.mxu0 0
        %1141 = vmatprep.subr.bf16.mxu0 0
        %1142 = vmatpush2.bf16.msra.mxu0 0
        %1143 = vmatprep.subr.bf16.mxu0 0
        %1144 = vmatpush2.bf16.msra.mxu0 0
        %1145 = vmatprep.subr.bf16.mxu0 0
        %1146 = vmatpush2.bf16.msra.mxu0 0
        %1147 = vmatprep.subr.bf16.mxu0 0
        %1148 = vmatpush2.bf16.msra.mxu0 0
        %1149 = vmatprep.mubr.bf16.mxu0 0
        %1150 = vmatmul.mubr.bf16.gmra.mxu0 %v1112
        %v1151 = vpop.f32.mrf.mxu0
        %v1152 = vadd.f32 0.0, %v1151
        %v1153 = vpop.f32.mrf.mxu0
        %v1154 = vpop.f32.mrf.mxu0
        %v1155 = vpop.f32.mrf.mxu0
        %1156 = vdwg.mxu0
        %v1157 = vpack.c.bf16 %v858, %v858
        %v1158 = vpack.c.bf16 %v956, %v956
        %v1159 = vpack.c.bf16 %v1054, %v1054
        %v1160 = vpack.c.bf16 %v1152, %v1152
        %v1225 = vunpack.c.l.b16 %v316
        %v1226 = vunpack.c.l.b16 %v317
        %v1227 = vunpack.c.l.b16 %v318
        %v1228 = vunpack.c.l.b16 %v319
        %v1229 = vunpack.c.l.b16 %v320
        %v1230 = vunpack.c.l.b16 %v321
        %v1231 = vunpack.c.l.b16 %v322
        %v1232 = vunpack.c.l.b16 %v323
        %v1233 = vunpack.c.l.b16 %v324
        %v1234 = vunpack.c.l.b16 %v325
        %v1235 = vunpack.c.l.b16 %v326
        %v1236 = vunpack.c.l.b16 %v327
        %v1237 = vunpack.c.l.b16 %v328
        %v1238 = vunpack.c.l.b16 %v329
        %v1239 = vunpack.c.l.b16 %v330
        %v1240 = vunpack.c.l.b16 %v331
        %v1241 = vunpack.c.l.b16 %v332
        %v1242 = vunpack.c.l.b16 %v333
        %v1243 = vunpack.c.l.b16 %v334
        %v1244 = vunpack.c.l.b16 %v335
        %v1245 = vunpack.c.l.b16 %v336
        %v1246 = vunpack.c.l.b16 %v337
        %v1247 = vunpack.c.l.b16 %v338
        %v1248 = vunpack.c.l.b16 %v339
        %v1249 = vunpack.c.l.b16 %v340
        %v1250 = vunpack.c.l.b16 %v341
        %v1251 = vunpack.c.l.b16 %v342
        %v1252 = vunpack.c.l.b16 %v343
        %v1253 = vunpack.c.l.b16 %v344
        %v1254 = vunpack.c.l.b16 %v345
        %v1255 = vunpack.c.l.b16 %v346
        %v1256 = vunpack.c.l.b16 %v347
        %v1257 = vunpack.c.l.b16 %v348
        %v1258 = vunpack.c.l.b16 %v349
        %v1259 = vunpack.c.l.b16 %v350
        %v1260 = vunpack.c.l.b16 %v351
        %v1261 = vunpack.c.l.b16 %v352
        %v1262 = vunpack.c.l.b16 %v353
        %v1263 = vunpack.c.l.b16 %v354
        %v1264 = vunpack.c.l.b16 %v355
        %v1265 = vunpack.c.l.b16 %v356
        %v1266 = vunpack.c.l.b16 %v357
        %v1267 = vunpack.c.l.b16 %v358
        %v1268 = vunpack.c.l.b16 %v359
        %v1269 = vunpack.c.l.b16 %v360
        %v1270 = vunpack.c.l.b16 %v361
        %v1271 = vunpack.c.l.b16 %v362
        %v1272 = vunpack.c.l.b16 %v363
        %v1273 = vunpack.c.l.b16 %v364
        %v1274 = vunpack.c.l.b16 %v365
        %v1275 = vunpack.c.l.b16 %v366
        %v1276 = vunpack.c.l.b16 %v367
        %v1277 = vunpack.c.l.b16 %v368
        %v1278 = vunpack.c.l.b16 %v369
        %v1279 = vunpack.c.l.b16 %v370
        %v1280 = vunpack.c.l.b16 %v371
        %v1281 = vunpack.c.l.b16 %v372
        %v1282 = vunpack.c.l.b16 %v373
        %v1283 = vunpack.c.l.b16 %v374
        %v1284 = vunpack.c.l.b16 %v375
        %v1285 = vunpack.c.l.b16 %v376
        %v1286 = vunpack.c.l.b16 %v377
        %v1287 = vunpack.c.l.b16 %v378
        %v1288 = vunpack.c.l.b16 %v379
        %v1289 = vpack.c.b16 %v1226, %v1225
        %v1290 = vpack.c.b16 %v1228, %v1227
        %v1291 = vpack.c.b16 %v1230, %v1229
        %v1292 = vpack.c.b16 %v1232, %v1231
        %v1293 = vpack.c.b16 %v1234, %v1233
        %v1294 = vpack.c.b16 %v1236, %v1235
        %v1295 = vpack.c.b16 %v1238, %v1237
        %v1296 = vpack.c.b16 %v1240, %v1239
        %v1297 = vpack.c.b16 %v1242, %v1241
        %v1298 = vpack.c.b16 %v1244, %v1243
        %v1299 = vpack.c.b16 %v1246, %v1245
        %v1300 = vpack.c.b16 %v1248, %v1247
        %v1301 = vpack.c.b16 %v1250, %v1249
        %v1302 = vpack.c.b16 %v1252, %v1251
        %v1303 = vpack.c.b16 %v1254, %v1253
        %v1304 = vpack.c.b16 %v1256, %v1255
        %v1305 = vpack.c.b16 %v1258, %v1257
        %v1306 = vpack.c.b16 %v1260, %v1259
        %v1307 = vpack.c.b16 %v1262, %v1261
        %v1308 = vpack.c.b16 %v1264, %v1263
        %v1309 = vpack.c.b16 %v1266, %v1265
        %v1310 = vpack.c.b16 %v1268, %v1267
        %v1311 = vpack.c.b16 %v1270, %v1269
        %v1312 = vpack.c.b16 %v1272, %v1271
        %v1313 = vpack.c.b16 %v1274, %v1273
        %v1314 = vpack.c.b16 %v1276, %v1275
        %v1315 = vpack.c.b16 %v1278, %v1277
        %v1316 = vpack.c.b16 %v1280, %v1279
        %v1317 = vpack.c.b16 %v1282, %v1281
        %v1318 = vpack.c.b16 %v1284, %v1283
        %v1319 = vpack.c.b16 %v1286, %v1285
        %v1320 = vpack.c.b16 %v1288, %v1287
        %1353 = vmatprep.subr.bf16.mxu0 0
        %1354 = vmatpush1.bf16.msra.mxu0 %v1296
        %1355 = vmatprep.subr.bf16.mxu0 0
        %1356 = vmatpush1.bf16.msra.mxu0 %v1295
        %1357 = vmatprep.subr.bf16.mxu0 0
        %1358 = vmatpush1.bf16.msra.mxu0 %v1294
        %1359 = vmatprep.subr.bf16.mxu0 0
        %1360 = vmatpush1.bf16.msra.mxu0 %v1293
        %1361 = vmatprep.subr.bf16.mxu0 0
        %1362 = vmatpush1.bf16.msra.mxu0 %v1292
        %1363 = vmatprep.subr.bf16.mxu0 0
        %1364 = vmatpush1.bf16.msra.mxu0 %v1291
        %1365 = vmatprep.subr.bf16.mxu0 0
        %1366 = vmatpush1.bf16.msra.mxu0 %v1290
        %1367 = vmatprep.subr.bf16.mxu0 0
        %1368 = vmatpush1.bf16.msra.mxu0 %v1289
        %1369 = vmatprep.subr.bf16.mxu0 0
        %1370 = vmatpush2.bf16.msra.mxu0 %v1304
        %1371 = vmatprep.subr.bf16.mxu0 0
        %1372 = vmatpush2.bf16.msra.mxu0 %v1303
        %1373 = vmatprep.subr.bf16.mxu0 0
        %1374 = vmatpush2.bf16.msra.mxu0 %v1302
        %1375 = vmatprep.subr.bf16.mxu0 0
        %1376 = vmatpush2.bf16.msra.mxu0 %v1301
        %1377 = vmatprep.subr.bf16.mxu0 0
        %1378 = vmatpush2.bf16.msra.mxu0 %v1300
        %1379 = vmatprep.subr.bf16.mxu0 0
        %1380 = vmatpush2.bf16.msra.mxu0 %v1299
        %1381 = vmatprep.subr.bf16.mxu0 0
        %1382 = vmatpush2.bf16.msra.mxu0 %v1298
        %1383 = vmatprep.subr.bf16.mxu0 0
        %1384 = vmatpush2.bf16.msra.mxu0 %v1297
        %1385 = vmatprep.mubr.bf16.mxu0 %v1158
        %1386 = vmatmul.mubr.bf16.gmra.mxu0 %v1157
        %v1387 = vpop.f32.mrf.mxu0
        %v1388 = vadd.f32 0.0, %v1387
        %v1389 = vpop.f32.mrf.mxu0
        %v1390 = vpop.f32.mrf.mxu0
        %v1391 = vpop.f32.mrf.mxu0
        %1392 = vdwg.mxu0
        %1393 = vmatprep.subr.bf16.mxu0 0
        %1394 = vmatpush1.bf16.msra.mxu0 %v1312
        %1395 = vmatprep.subr.bf16.mxu0 0
        %1396 = vmatpush1.bf16.msra.mxu0 %v1311
        %1397 = vmatprep.subr.bf16.mxu0 0
        %1398 = vmatpush1.bf16.msra.mxu0 %v1310
        %1399 = vmatprep.subr.bf16.mxu0 0
        %1400 = vmatpush1.bf16.msra.mxu0 %v1309
        %1401 = vmatprep.subr.bf16.mxu0 0
        %1402 = vmatpush1.bf16.msra.mxu0 %v1308
        %1403 = vmatprep.subr.bf16.mxu0 0
        %1404 = vmatpush1.bf16.msra.mxu0 %v1307
        %1405 = vmatprep.subr.bf16.mxu0 0
        %1406 = vmatpush1.bf16.msra.mxu0 %v1306
        %1407 = vmatprep.subr.bf16.mxu0 0
        %1408 = vmatpush1.bf16.msra.mxu0 %v1305
        %1409 = vmatprep.subr.bf16.mxu0 0
        %1410 = vmatpush2.bf16.msra.mxu0 %v1320
        %1411 = vmatprep.subr.bf16.mxu0 0
        %1412 = vmatpush2.bf16.msra.mxu0 %v1319
        %1413 = vmatprep.subr.bf16.mxu0 0
        %1414 = vmatpush2.bf16.msra.mxu0 %v1318
        %1415 = vmatprep.subr.bf16.mxu0 0
        %1416 = vmatpush2.bf16.msra.mxu0 %v1317
        %1417 = vmatprep.subr.bf16.mxu0 0
        %1418 = vmatpush2.bf16.msra.mxu0 %v1316
        %1419 = vmatprep.subr.bf16.mxu0 0
        %1420 = vmatpush2.bf16.msra.mxu0 %v1315
        %1421 = vmatprep.subr.bf16.mxu0 0
        %1422 = vmatpush2.bf16.msra.mxu0 %v1314
        %1423 = vmatprep.subr.bf16.mxu0 0
        %1424 = vmatpush2.bf16.msra.mxu0 %v1313
        %1425 = vmatprep.mubr.bf16.mxu0 %v1160
        %1426 = vmatmul.mubr.bf16.gmra.mxu0 %v1159
        %v1427 = vpop.f32.mrf.mxu0
        %v1428 = vadd.f32 %v1388, %v1427
        %v1429 = vpop.f32.mrf.mxu0
        %v1430 = vpop.f32.mrf.mxu0
        %v1431 = vpop.f32.mrf.mxu0
        %1432 = vdwg.mxu0
        %v1433 = vpack.c.bf16 %v1428, %v1428
        %v1436 = vunpack.c.l.b16 %v290
        %v1437 = vunpack.c.l.b16 %v291
        %v1438 = vpack.c.b16 %v1437, %v1436
        %v1440 = vsel %vm803, %v1438, 0
        %v1443 = vsel %vm819, %v1433, 0
        %1445 = vmatprep.subr.bf16.mxu0 0
        %1446 = vmatpush1.bf16.msra.mxu0 0
        %1447 = vmatprep.subr.bf16.mxu0 0
        %1448 = vmatpush1.bf16.msra.mxu0 0
        %1449 = vmatprep.subr.bf16.mxu0 0
        %1450 = vmatpush1.bf16.msra.mxu0 0
        %1451 = vmatprep.subr.bf16.mxu0 0
        %1452 = vmatpush1.bf16.msra.mxu0 0
        %1453 = vmatprep.subr.bf16.mxu0 0
        %1454 = vmatpush1.bf16.msra.mxu0 0
        %1455 = vmatprep.subr.bf16.mxu0 0
        %1456 = vmatpush1.bf16.msra.mxu0 0
        %1457 = vmatprep.subr.bf16.mxu0 0
        %1458 = vmatpush1.bf16.msra.mxu0 0
        %1459 = vmatprep.subr.bf16.mxu0 0
        %1460 = vmatpush1.bf16.msra.mxu0 %v1443
        %1461 = vmatprep.subr.bf16.mxu0 0
        %1462 = vmatpush2.bf16.msra.mxu0 0
        %1463 = vmatprep.subr.bf16.mxu0 0
        %1464 = vmatpush2.bf16.msra.mxu0 0
        %1465 = vmatprep.subr.bf16.mxu0 0
        %1466 = vmatpush2.bf16.msra.mxu0 0
        %1467 = vmatprep.subr.bf16.mxu0 0
        %1468 = vmatpush2.bf16.msra.mxu0 0
        %1469 = vmatprep.subr.bf16.mxu0 0
        %1470 = vmatpush2.bf16.msra.mxu0 0
        %1471 = vmatprep.subr.bf16.mxu0 0
        %1472 = vmatpush2.bf16.msra.mxu0 0
        %1473 = vmatprep.subr.bf16.mxu0 0
        %1474 = vmatpush2.bf16.msra.mxu0 0
        %1475 = vmatprep.subr.bf16.mxu0 0
        %1476 = vmatpush2.bf16.msra.mxu0 0
        %1477 = vmatprep.mubr.bf16.mxu0 0
        %1478 = vmatmul.mubr.bf16.gmra.mxu0 %v1440
        %v1479 = vpop.f32.mrf.mxu0
        %v1480 = vadd.f32 0.0, %v1479
        %v1481 = vpop.f32.mrf.mxu0
        %v1482 = vpop.f32.mrf.mxu0
        %v1483 = vadd.f32 0.0, %v1482
        %v1484 = vpop.f32.mrf.mxu0
        %1485 = vdwg.mxu0
        %s1486 = sld [smem:[#allocation2]]
        %v1487 = vstv %s1486
        %v1488 = vmul.f32 %v1428, %v1487
        %s1489 = sld [smem:[#allocation2 + $0x2]]
        %v1490 = vstv %s1489
        %v1491 = vadd.f32 %v1488, %v1490
        %s1492 = sld [smem:[#allocation2 + $0x1]]
        %v1493 = vstv %s1492
        %v1494 = vmul.f32 %v1428, %v1493
        %s1495 = sld [smem:[#allocation2 + $0x3]]
        %v1496 = vstv %s1495
        %v1497 = vadd.f32 %v1494, %v1496
        %v1498 = vmax.f32 %v1491, %v1497
        %v1499 = vsub.f32 %v1491, %v1498
        %v1500 = vmul.f32 %v1499, 1.442695
        %v1501 = vpow.pop %v1500
        %v1502 = vsub.f32 %v1497, %v1498
        %v1503 = vmul.f32 %v1502, 1.442695
        %v1504 = vpow.pop %v1503
        %v1505 = vadd.f32 %v1501, %v1504
        %v1506 = vrcp.pop %v1505
        %v1507 = vmul.f32 %v1501, %v1506
        %v1508 = vmul.f32 %v1480, %v1507
        %v1509 = vadd.f32 %v1508, 0.0
        %v1510 = vmul.f32 %v1504, %v1506
        %v1511 = vmul.f32 %v1483, %v1510
        %v1512 = vadd.f32 %v1509, %v1511
        %v1513 = vsub.f32 %v1428, %v1512
        %v1514 = vpack.c.bf16 %v1513, %v1513
        %v1515 = vld [vmem:[%s4] sm:$0xf]
        %v1516 = vld [vmem:[%s4 + $0x4] sm:$0xf]
        %v1517 = vld [vmem:[%s4 + $0x8] sm:$0xf]
        %v1518 = vld [vmem:[%s4 + $0xc] sm:$0xf]
        %v1523 = vunpack.c.l.b16 %v1515
        %v1524 = vunpack.c.l.b16 %v1516
        %v1525 = vunpack.c.l.b16 %v1517
        %v1526 = vunpack.c.l.b16 %v1518
        %v1527 = vpack.c.b16 %v1524, %v1523
        %v1528 = vpack.c.b16 %v1526, %v1525
        %v1532 = vsel %vm501, %v1514, 0
        %1534 = vmatprep.subr.bf16.mxu0 0
        %1535 = vmatpush1.bf16.msra.mxu0 0
        %1536 = vmatprep.subr.bf16.mxu0 0
        %1537 = vmatpush1.bf16.msra.mxu0 0
        %1538 = vmatprep.subr.bf16.mxu0 0
        %1539 = vmatpush1.bf16.msra.mxu0 0
        %1540 = vmatprep.subr.bf16.mxu0 0
        %1541 = vmatpush1.bf16.msra.mxu0 0
        %1542 = vmatprep.subr.bf16.mxu0 0
        %1543 = vmatpush1.bf16.msra.mxu0 0
        %1544 = vmatprep.subr.bf16.mxu0 0
        %1545 = vmatpush1.bf16.msra.mxu0 0
        %1546 = vmatprep.subr.bf16.mxu0 0
        %1547 = vmatpush1.bf16.msra.mxu0 %v1528
        %1548 = vmatprep.subr.bf16.mxu0 0
        %1549 = vmatpush1.bf16.msra.mxu0 %v1527
        %1550 = vmatprep.subr.bf16.mxu0 0
        %1551 = vmatpush2.bf16.msra.mxu0 0
        %1552 = vmatprep.subr.bf16.mxu0 0
        %1553 = vmatpush2.bf16.msra.mxu0 0
        %1554 = vmatprep.subr.bf16.mxu0 0
        %1555 = vmatpush2.bf16.msra.mxu0 0
        %1556 = vmatprep.subr.bf16.mxu0 0
        %1557 = vmatpush2.bf16.msra.mxu0 0
        %1558 = vmatprep.subr.bf16.mxu0 0
        %1559 = vmatpush2.bf16.msra.mxu0 0
        %1560 = vmatprep.subr.bf16.mxu0 0
        %1561 = vmatpush2.bf16.msra.mxu0 0
        %1562 = vmatprep.subr.bf16.mxu0 0
        %1563 = vmatpush2.bf16.msra.mxu0 0
        %1564 = vmatprep.subr.bf16.mxu0 0
        %1565 = vmatpush2.bf16.msra.mxu0 0
        %1566 = vmatprep.mubr.bf16.mxu0 0
        %1567 = vmatmul.mubr.bf16.gmra.mxu0 %v1532
        %v1568 = vpop.f32.mrf.mxu0
        %v1569 = vadd.f32 0.0, %v1568
        %v1570 = vpop.f32.mrf.mxu0
        %v1571 = vpop.f32.mrf.mxu0
        %v1572 = vpop.f32.mrf.mxu0
        %1573 = vdwg.mxu0
        %v1574 = vmax.f32 %v1569, 0.0
        %v1575 = vpack.c.bf16 %v1574, %v1574
        %v1576 = vld [vmem:[%s5] sm:$0xf]
        %v1577 = vld [vmem:[%s5 + $0x4] sm:$0xf]
        %v1578 = vld [vmem:[%s5 + $0x8] sm:$0xf]
        %v1579 = vld [vmem:[%s5 + $0xc] sm:$0xf]
        %v1580 = vld [vmem:[%s5 + $0x10] sm:$0xf]
        %v1581 = vld [vmem:[%s5 + $0x14] sm:$0xf]
        %v1582 = vld [vmem:[%s5 + $0x18] sm:$0xf]
        %v1583 = vld [vmem:[%s5 + $0x1c] sm:$0xf]
        %v1592 = vunpack.c.l.b16 %v1576
        %v1593 = vunpack.c.l.b16 %v1577
        %v1594 = vunpack.c.l.b16 %v1578
        %v1595 = vunpack.c.l.b16 %v1579
        %v1596 = vunpack.c.l.b16 %v1580
        %v1597 = vunpack.c.l.b16 %v1581
        %v1598 = vunpack.c.l.b16 %v1582
        %v1599 = vunpack.c.l.b16 %v1583
        %v1600 = vpack.c.b16 %v1593, %v1592
        %v1601 = vpack.c.b16 %v1595, %v1594
        %v1602 = vpack.c.b16 %v1597, %v1596
        %v1603 = vpack.c.b16 %v1599, %v1598
        %vm1608 = vcmask 523264
        %v1610 = vsel %vm1608, %v1575, 0
        %1612 = vmatprep.subr.bf16.mxu0 0
        %1613 = vmatpush1.bf16.msra.mxu0 0
        %1614 = vmatprep.subr.bf16.mxu0 0
        %1615 = vmatpush1.bf16.msra.mxu0 0
        %1616 = vmatprep.subr.bf16.mxu0 0
        %1617 = vmatpush1.bf16.msra.mxu0 0
        %1618 = vmatprep.subr.bf16.mxu0 0
        %1619 = vmatpush1.bf16.msra.mxu0 0
        %1620 = vmatprep.subr.bf16.mxu0 0
        %1621 = vmatpush1.bf16.msra.mxu0 %v1603
        %1622 = vmatprep.subr.bf16.mxu0 0
        %1623 = vmatpush1.bf16.msra.mxu0 %v1602
        %1624 = vmatprep.subr.bf16.mxu0 0
        %1625 = vmatpush1.bf16.msra.mxu0 %v1601
        %1626 = vmatprep.subr.bf16.mxu0 0
        %1627 = vmatpush1.bf16.msra.mxu0 %v1600
        %1628 = vmatprep.subr.bf16.mxu0 0
        %1629 = vmatpush2.bf16.msra.mxu0 0
        %1630 = vmatprep.subr.bf16.mxu0 0
        %1631 = vmatpush2.bf16.msra.mxu0 0
        %1632 = vmatprep.subr.bf16.mxu0 0
        %1633 = vmatpush2.bf16.msra.mxu0 0
        %1634 = vmatprep.subr.bf16.mxu0 0
        %1635 = vmatpush2.bf16.msra.mxu0 0
        %1636 = vmatprep.subr.bf16.mxu0 0
        %1637 = vmatpush2.bf16.msra.mxu0 0
        %1638 = vmatprep.subr.bf16.mxu0 0
        %1639 = vmatpush2.bf16.msra.mxu0 0
        %1640 = vmatprep.subr.bf16.mxu0 0
        %1641 = vmatpush2.bf16.msra.mxu0 0
        %1642 = vmatprep.subr.bf16.mxu0 0
        %1643 = vmatpush2.bf16.msra.mxu0 0
        %1644 = vmatprep.mubr.bf16.mxu0 0
        %1645 = vmatmul.mubr.bf16.gmra.mxu0 %v1610
        %v1646 = vpop.f32.mrf.mxu0
        %v1647 = vadd.f32 0.0, %v1646
        %v1648 = vpop.f32.mrf.mxu0
        %v1649 = vpop.f32.mrf.mxu0
        %v1650 = vpop.f32.mrf.mxu0
        %1651 = vdwg.mxu0
        %v1652 = vadd.f32 %v1513, %v1647
        %v1653 = vpack.c.bf16 %v1652, %v1652
        %v1655 = vsel %vm819, %v1653, 0
        %1657 = vmatprep.subr.bf16.mxu0 0
        %1658 = vmatpush1.bf16.msra.mxu0 0
        %1659 = vmatprep.subr.bf16.mxu0 0
        %1660 = vmatpush1.bf16.msra.mxu0 0
        %1661 = vmatprep.subr.bf16.mxu0 0
        %1662 = vmatpush1.bf16.msra.mxu0 0
        %1663 = vmatprep.subr.bf16.mxu0 0
        %1664 = vmatpush1.bf16.msra.mxu0 0
        %1665 = vmatprep.subr.bf16.mxu0 0
        %1666 = vmatpush1.bf16.msra.mxu0 0
        %1667 = vmatprep.subr.bf16.mxu0 0
        %1668 = vmatpush1.bf16.msra.mxu0 0
        %1669 = vmatprep.subr.bf16.mxu0 0
        %1670 = vmatpush1.bf16.msra.mxu0 0
        %1671 = vmatprep.subr.bf16.mxu0 0
        %1672 = vmatpush1.bf16.msra.mxu0 %v1655
        %1673 = vmatprep.subr.bf16.mxu0 0
        %1674 = vmatpush2.bf16.msra.mxu0 0
        %1675 = vmatprep.subr.bf16.mxu0 0
        %1676 = vmatpush2.bf16.msra.mxu0 0
        %1677 = vmatprep.subr.bf16.mxu0 0
        %1678 = vmatpush2.bf16.msra.mxu0 0
        %1679 = vmatprep.subr.bf16.mxu0 0
        %1680 = vmatpush2.bf16.msra.mxu0 0
        %1681 = vmatprep.subr.bf16.mxu0 0
        %1682 = vmatpush2.bf16.msra.mxu0 0
        %1683 = vmatprep.subr.bf16.mxu0 0
        %1684 = vmatpush2.bf16.msra.mxu0 0
        %1685 = vmatprep.subr.bf16.mxu0 0
        %1686 = vmatpush2.bf16.msra.mxu0 0
        %1687 = vmatprep.subr.bf16.mxu0 0
        %1688 = vmatpush2.bf16.msra.mxu0 0
        %1689 = vmatprep.mubr.bf16.mxu0 0
        %1690 = vmatmul.mubr.bf16.gmra.mxu0 %v1440
        %v1691 = vpop.f32.mrf.mxu0
        %v1692 = vadd.f32 0.0, %v1691
        %v1693 = vpop.f32.mrf.mxu0
        %v1694 = vpop.f32.mrf.mxu0
        %v1695 = vadd.f32 0.0, %v1694
        %v1696 = vpop.f32.mrf.mxu0
        %1697 = vdwg.mxu0
        %s1698 = sld [smem:[#allocation2 + $0x4]]
        %v1699 = vstv %s1698
        %v1700 = vmul.f32 %v1652, %v1699
        %s1701 = sld [smem:[#allocation2 + $0x6]]
        %v1702 = vstv %s1701
        %v1703 = vadd.f32 %v1700, %v1702
        %s1704 = sld [smem:[#allocation2 + $0x5]]
        %v1705 = vstv %s1704
        %v1706 = vmul.f32 %v1652, %v1705
        %s1707 = sld [smem:[#allocation2 + $0x7]]
        %v1708 = vstv %s1707
        %v1709 = vadd.f32 %v1706, %v1708
        %v1710 = vmax.f32 %v1703, %v1709
        %v1711 = vsub.f32 %v1703, %v1710
        %v1712 = vmul.f32 %v1711, 1.442695
        %v1713 = vpow.pop %v1712
        %v1714 = vsub.f32 %v1709, %v1710
        %v1715 = vmul.f32 %v1714, 1.442695
        %v1716 = vpow.pop %v1715
        %v1717 = vadd.f32 %v1713, %v1716
        %v1718 = vrcp.pop %v1717
        %v1719 = vmul.f32 %v1713, %v1718
        %v1720 = vmul.f32 %v1692, %v1719
        %v1721 = vadd.f32 %v1720, 0.0
        %v1722 = vmul.f32 %v1716, %v1718
        %v1723 = vmul.f32 %v1695, %v1722
        %v1724 = vadd.f32 %v1721, %v1723
        %v1725 = vsub.f32 %v1652, %v1724
        %1726 = vst.msk [vmem:[%s283] sm:$0xff] %vm501, %v1725
        %s1727 = sand.u32 %s182, 1
        %s1728 = scalar_lea.sflag [#allocation3], %s1727
        %s1729 = sand.u32 %s182, 1
        %s1730 = smul.addr %s1729, 8
        %s1731 = scalar_lea.vmem [#allocation5], %s1730
        // Predicated region
        $region53: #{tpu_custom_call.1} parent=47 // pred_check
          %p1732 = pneg %p192
        $region54: #{tpu_custom_call.1} parent=47 // pred_check_branch
          %1734 = sbr.rel (%p1732) target = $region56
        $region55: #{tpu_custom_call.1} parent=47 // pred_region
          %s1736 = ssub.s32 128, 128
          %1737 = vsyncadd %s1728, %s1736
          %s1738 = smul.addr %s22, 128
          %s1739 = scalar_lea.hbm %s7, %s1738
          %s1741 = sshll.u32 %s1731, 4
          %s1742 = int_to_ptr.vmem [resolvable:$true] %s1741
          %1744 = dma.vmem_to_hbm [thread:$0]  %s1742, 128, %s1739, %s1728
        $region56: #{tpu_custom_call.1} parent=47 // pred_fallthru
          _
      $region48: #{tpu_custom_call.1} parent=5 // pred_fallthru
        _
      %p1745 = scmp.le.s32.totalorder 2, %s17
      // Predicated region
      $region57: #{tpu_custom_call.1} parent=5 // pred_check
        %p1746 = pneg %p1745
      $region58: #{tpu_custom_call.1} parent=5 // pred_check_branch
        %1748 = sbr.rel (%p1746) target = $region60
      $region59: #{tpu_custom_call.1} parent=5 // pred_region
        %s1749 = ssub.s32 %s17, 2
        // Predicated region
        $region61: #{tpu_custom_call.1} parent=59 // pred_check
          %p1750 = pneg %p198
        $region62: #{tpu_custom_call.1} parent=59 // pred_check_branch
          %1752 = sbr.rel (%p1750) target = $region64
        $region63: #{tpu_custom_call.1} parent=59 // pred_region
          %s1753 = sand.u32 %s183, 1
          %s1754 = scalar_lea.sflag [#allocation3], %s1753
          %s1755 = sand.u32 %s183, 1
          %s1756 = smul.addr %s1755, 8
          %s1757 = scalar_lea.vmem [#allocation5], %s1756
          %1758 = dma.done %s1754, 128
        $region64: #{tpu_custom_call.1} parent=59 // pred_fallthru
          _
      $region60: #{tpu_custom_call.1} parent=5 // pred_fallthru
        _
    $region6: #{tpu_custom_call.1} parent=1 // loop_footer
      %s21 = sadd.s32 1, %s17
    $region7: #{tpu_custom_call.1} parent=1 // loop_footer_branch
      %16 = sbr.rel target = $region3
    $region8: #{tpu_custom_call.1} parent=1 // loop_exit
      _
    %1759 = vsyncpa [#allocation3], 1
    %s1760 = scalar_lea.sflag [#allocation3], 1
    %1761 = vsyncpa %s1760, 1
    %1762 = vsyncpa [#allocation4], 1
    %s1763 = scalar_lea.sflag [#allocation4], 1
    %1764 = vsyncpa %s1763, 1

</llo_original>
